<compile_context>
chip_gen: v6e
topology: v6e:2x2x1
jax: 0.10.0
libtpu: 0.0.40
codegen_flags: <defaults>
</compile_context>

<pallas_src>
import functools

import jax
import jax.numpy as jnp
from jax.experimental import pallas as pl
from jax.experimental.pallas import tpu as pltpu

_MARGIN = 32  # left/right zero margin (>= 17) of the flattened-row conv buffer


# ----------------------------- fused forward kernel -------------------------
def fused_forward_kernel(is_manip_ref, x_ref, wconv_ref, bconv_ref, wcls_ref,
                         extra_ref, o_ref, srow_ref, patch_ref,
                         *, H, W, Cin, Cout, Fpad):
    # is_manip_ref: (B,)            SMEM scalars
    # x_ref:        (1, Cin, H*W)   one NCHW image, spatial flattened on lanes
    # wconv_ref:    (Cout, 9*Cin)   conv weight, tap-major
    # bconv_ref:    (Cout, 1)       conv bias
    # wcls_ref:     (H*W, Cout*Fpad) classifier weight w/ pool+flatten folded in
    # extra_ref:    (2, Fpad)       row0 = classifier bias, row1 = is_manip weight
    # o_ref:        (1, 1, Fpad)    padded logits for this batch element
    # srow_ref:     (Cin, H*W + 2*_MARGIN) VMEM scratch (zero-padded rows)
    # patch_ref:    (9*Cin, H*W)    VMEM scratch (im2col patch matrix)
    S = H * W
    b = pl.program_id(0)

    # ---- in-kernel zero padding (replaces wrapper-side jnp.pad) -------------
    srow_ref[...] = jnp.zeros_like(srow_ref)
    srow_ref[:, _MARGIN:_MARGIN + S] = x_ref[0]

    # w-coordinate of each output position, for the conv column-boundary masks
    lane = jax.lax.broadcasted_iota(jnp.int32, (Cin, S), 1)
    w_coord = lane % W

    # ---- im2col: 9 shifted slices -> (9*Cin, S) patch matrix in VMEM --------
    for dh in range(3):
        for dw in range(3):
            k = dh * 3 + dw
            start = _MARGIN + (dh - 1) * W + (dw - 1)
            tap = srow_ref[:, start:start + S]                    # (Cin, S)
            if dw == 0:                      # left border of each image row
                tap = jnp.where(w_coord >= 1, tap, 0.0)
            elif dw == 2:                    # right border of each image row
                tap = jnp.where(w_coord <= W - 2, tap, 0.0)
            patch_ref[k * Cin:(k + 1) * Cin, :] = tap

    # ---- conv as ONE MXU matmul + bias + ReLU -> (Cout, S) ------------------
    acc = jnp.dot(wconv_ref[...], patch_ref[...],
                  preferred_element_type=jnp.float32)
    acc = jnp.maximum(acc + bconv_ref[...], 0.0)

    # ---- classifier (avg-pool + NCHW flatten folded into wcls at trace time)
    # r[c, c'*Fpad + f] = sum_s acc[c, s] * wcls[s, c'*Fpad + f]; we need the
    # lane-aligned "diagonal" blocks c == c'.
    r = jnp.dot(acc, wcls_ref[...], preferred_element_type=jnp.float32)
    out = extra_ref[0:1, :] + is_manip_ref[b] * extra_ref[1:2, :]
    for c in range(Cout):
        out = out + r[c:c + 1, c * Fpad:(c + 1) * Fpad]
    o_ref[0] = out                                               # (1, Fpad) store


# ----------------------------- ManipModel forward ---------------------------
def manip_model_forward(x_nchw, is_manip, params, *, fpad=128):
    """x_nchw: (B, Cin, H, W) float32; is_manip: (B, 1) float32."""
    B, Cin, H, W = x_nchw.shape
    conv_w = params["conv_w"]            # (3, 3, Cin, Cf)  HWIO
    conv_b = params["conv_b"]            # (Cf,)
    lin_w = params["lin_w"]              # (Cf*(H//2)*(W//2) + 1, F)
    lin_b = params["lin_b"]              # (F,)
    Cf = conv_w.shape[-1]
    F = lin_w.shape[-1]
    Hp, Wp = H // 2, W // 2
    S = H * W
    n_feat = Cf * Hp * Wp

    # -------- trace-time weight preparation (weights only, no per-pixel work)
    wconv = jnp.transpose(conv_w, (3, 0, 1, 2)).reshape(Cf, 9 * Cin)   # (Cf, 36)
    bconv = conv_b.reshape(Cf, 1)
    # Fold avg-pool(2x2) + NCHW flatten + layout permutation into the classifier
    # weight: wcls[h*W+w, c*fpad+f] = 0.25 * lin_w[c*Hp*Wp + (h//2)*Wp + (w//2), f]
    w_feat = lin_w[:n_feat].reshape(Cf, Hp, Wp, F)
    w_up = jnp.repeat(jnp.repeat(w_feat, 2, axis=1), 2, axis=2) * 0.25  # (Cf,H,W,F)
    w_up = jnp.transpose(w_up, (1, 2, 0, 3))                            # (H,W,Cf,F)
    w_up = jnp.pad(w_up, ((0, 0), (0, 0), (0, 0), (0, fpad - F)))
    wcls = w_up.reshape(S, Cf * fpad)                                   # (256, 1024)
    extra = jnp.stack([jnp.pad(lin_b, (0, fpad - F)),
                       jnp.pad(lin_w[n_feat], (0, fpad - F))])          # (2, fpad)

    x2d = x_nchw.reshape(B, Cin, S)          # contiguity-preserving (free) reshape
    is_manip_flat = is_manip.reshape(B).astype(jnp.float32)

    kernel = functools.partial(fused_forward_kernel, H=H, W=W, Cin=Cin,
                               Cout=Cf, Fpad=fpad)
    out_pad = pl.pallas_call(
        kernel,
        out_shape=jax.ShapeDtypeStruct((B, 1, fpad), jnp.float32),
        grid=(B,),
        in_specs=[
            pl.BlockSpec(memory_space=pltpu.MemorySpace.SMEM),       # is_manip
            pl.BlockSpec((1, Cin, S), lambda b: (b, 0, 0)),          # x (per image)
            pl.BlockSpec((Cf, 9 * Cin), lambda b: (0, 0)),           # conv weight
            pl.BlockSpec((Cf, 1), lambda b: (0, 0)),                 # conv bias
            pl.BlockSpec((S, Cf * fpad), lambda b: (0, 0)),          # classifier w
            pl.BlockSpec((2, fpad), lambda b: (0, 0)),               # bias + manip w
        ],
        out_specs=pl.BlockSpec((1, 1, fpad), lambda b: (b, 0, 0)),
        scratch_shapes=[
            pltpu.VMEM((Cin, S + 2 * _MARGIN), jnp.float32),         # padded rows
            pltpu.VMEM((9 * Cin, S), jnp.float32),                   # im2col patches
        ],
        compiler_params=pltpu.CompilerParams(
            dimension_semantics=("parallel",)),
    )(is_manip_flat, x2d, wconv, bconv, wcls, extra)

    return out_pad[:, 0, :F]


# ----------------------------- pure-JAX reference ---------------------------
def manip_model_reference(x_nchw, is_manip, params):
    hp = jax.lax.Precision.HIGHEST
    x_nhwc = jnp.transpose(x_nchw, (0, 2, 3, 1))
    y = jax.lax.conv_general_dilated(
        x_nhwc, params["conv_w"], window_strides=(1, 1), padding="SAME",
        dimension_numbers=("NHWC", "HWIO", "NHWC"), precision=hp,
    ) + params["conv_b"]
    y = jnp.maximum(y, 0.0)
    B, H, W, C = y.shape
    y = y.reshape(B, H // 2, 2, W // 2, 2, C).mean(axis=(2, 4))
    feat = jnp.transpose(y, (0, 3, 1, 2)).reshape(B, -1)      # NCHW .view(B, -1)
    ci = jnp.concatenate([feat, is_manip], axis=-1)
    return jnp.dot(ci, params["lin_w"], precision=hp) + params["lin_b"]


if __name__ == "__main__":
    B, Cin, H, W = 2, 4, 16, 16
    Cf, num_classes = 8, 10
    feat_dim = Cf * (H // 2) * (W // 2)

    key = jax.random.PRNGKey(0)
    k1, k2, k3, k4, k5, k6 = jax.random.split(key, 6)

    x = jax.random.normal(k1, (B, Cin, H, W), jnp.float32)
    is_manip = (jax.random.uniform(k2, (B, 1)) > 0.5).astype(jnp.float32)

    params = {
        "conv_w": jax.random.normal(k3, (3, 3, Cin, Cf), jnp.float32) * 0.1,
        "conv_b": jax.random.normal(k4, (Cf,), jnp.float32) * 0.1,
        "lin_w": jax.random.normal(k5, (feat_dim + 1, num_classes), jnp.float32) * 0.05,
        "lin_b": jax.random.normal(k6, (num_classes,), jnp.float32) * 0.05,
    }

    out = manip_model_forward(x, is_manip, params)
    out = jax.block_until_ready(out)

    ref = manip_model_reference(x, is_manip, params)
    assert out.shape == (B, num_classes)
    assert jnp.allclose(out, ref, atol=5e-3, rtol=5e-3), "mismatch vs reference"

    print("KERNEL_OK")
</pallas_src>

<mosaic_0001>
module attributes {stable_mosaic.version = 11 : i64} {
  func.func @fused_forward_kernel(%arg0: i32, %arg1: memref<2xf32, #tpu.memory_space<smem>>, %arg2: memref<1x4x256xf32, #tpu.memory_space<vmem>>, %arg3: memref<8x36xf32, #tpu.memory_space<vmem>>, %arg4: memref<8x1xf32, #tpu.memory_space<vmem>>, %arg5: memref<256x1024xf32, #tpu.memory_space<vmem>>, %arg6: memref<2x128xf32, #tpu.memory_space<vmem>>, %arg7: memref<1x1x128xf32, #tpu.memory_space<vmem>>, %arg8: memref<4x320xf32, #tpu.memory_space<vmem>>, %arg9: memref<36x256xf32, #tpu.memory_space<vmem>>) attributes {dimension_semantics = [#tpu.dimension_semantics<parallel>], iteration_bounds = array<i64: 2>, scalar_prefetch = 0 : i64, scratch_operands = 2 : i64, tpu.core_type = #tpu.core_type<tc>, window_params = [{transform_indices = @transform_0, window_bounds = array<i64: 2>}, {transform_indices = @transform_1, window_bounds = array<i64: 1, 4, 256>}, {pipeline_mode = #tpu.pipeline_mode<synchronous>, transform_indices = @transform_2, window_bounds = array<i64: 8, 36>}, {pipeline_mode = #tpu.pipeline_mode<synchronous>, transform_indices = @transform_3, window_bounds = array<i64: 8, 1>}, {pipeline_mode = #tpu.pipeline_mode<synchronous>, transform_indices = @transform_4, window_bounds = array<i64: 256, 1024>}, {pipeline_mode = #tpu.pipeline_mode<synchronous>, transform_indices = @transform_5, window_bounds = array<i64: 2, 128>}, {transform_indices = @transform_6, window_bounds = array<i64: 1, 1, 128>}]} {
    %cst = arith.constant 0.000000e+00 : f32
    %0 = vector.broadcast %cst : f32 to vector<4x320xf32>
    %c0 = arith.constant 0 : index
    %c0_0 = arith.constant 0 : index
    %1 = vector.load %arg8[%c0, %c0_0] : memref<4x320xf32, #tpu.memory_space<vmem>>, vector<4x320xf32>
    tpu.vector_store %arg8[%c0, %c0_0], %0 {strides = array<i32>} : memref<4x320xf32, #tpu.memory_space<vmem>>, vector<4x320xf32>,
    %c0_1 = arith.constant 0 : index
    %c0_2 = arith.constant 0 : index
    %c0_3 = arith.constant 0 : index
    %2 = vector.load %arg2[%c0_1, %c0_2, %c0_3] : memref<1x4x256xf32, #tpu.memory_space<vmem>>, vector<1x4x256xf32>
    %3 = vector.shape_cast %2 : vector<1x4x256xf32> to vector<4x256xf32>
    %c0_4 = arith.constant 0 : index
    %c32 = arith.constant 32 : index
    %4 = vector.load %arg8[%c0_4, %c32] : memref<4x320xf32, #tpu.memory_space<vmem>>, vector<4x256xf32>
    tpu.vector_store %arg8[%c0_4, %c32], %3 {strides = array<i32>} : memref<4x320xf32, #tpu.memory_space<vmem>>, vector<4x256xf32>,
    %5 = tpu.iota {dimensions = array<i32: 1>} : vector<4x256xi32>
    %c16_i32 = arith.constant 16 : i32
    %c0_i32 = arith.constant 0 : i32
    %6 = arith.cmpi eq, %c16_i32, %c0_i32 : i32
    %c1_i32 = arith.constant 1 : i32
    %7 = arith.select %6, %c1_i32, %c16_i32 : i32
    %8 = vector.broadcast %7 : i32 to vector<4x256xi32>
    %9 = arith.remsi %5, %8 : vector<4x256xi32>
    %c0_i32_5 = arith.constant 0 : i32
    %10 = vector.broadcast %c0_i32_5 : i32 to vector<4x256xi32>
    %11 = arith.cmpi ne, %9, %10 : vector<4x256xi32>
    %c0_i32_6 = arith.constant 0 : i32
    %12 = vector.broadcast %c0_i32_6 : i32 to vector<4x256xi32>
    %13 = arith.cmpi slt, %9, %12 : vector<4x256xi32>
    %c0_i32_7 = arith.constant 0 : i32
    %14 = arith.cmpi slt, %7, %c0_i32_7 : i32
    %15 = vector.broadcast %14 : i1 to vector<4x256xi1>
    %16 = vector.broadcast %15 : vector<4x256xi1> to vector<4x256xi1>
    %17 = arith.xori %13, %16 : vector<4x256xi1>
    %18 = arith.andi %17, %11 : vector<4x256xi1>
    %19 = vector.broadcast %7 : i32 to vector<4x256xi32>
    %20 = arith.addi %9, %19 : vector<4x256xi32>
    %21 = arith.select %18, %20, %9 : vector<4x256xi1>, vector<4x256xi32>
    %c0_8 = arith.constant 0 : index
    %c15 = arith.constant 15 : index
    %22 = vector.load %arg8[%c0_8, %c15] : memref<4x320xf32, #tpu.memory_space<vmem>>, vector<4x256xf32>
    %c1_i32_9 = arith.constant 1 : i32
    %23 = vector.broadcast %c1_i32_9 : i32 to vector<4x256xi32>
    %24 = arith.cmpi sge, %21, %23 : vector<4x256xi32>
    %cst_10 = arith.constant 0.000000e+00 : f32
    %25 = vector.broadcast %cst_10 : f32 to vector<4x256xf32>
    %26 = arith.select %24, %22, %25 : vector<4x256xi1>, vector<4x256xf32>
    %c0_11 = arith.constant 0 : index
    %c0_12 = arith.constant 0 : index
    %27 = vector.load %arg9[%c0_11, %c0_12] : memref<36x256xf32, #tpu.memory_space<vmem>>, vector<4x256xf32>
    tpu.vector_store %arg9[%c0_11, %c0_12], %26 {strides = array<i32>} : memref<36x256xf32, #tpu.memory_space<vmem>>, vector<4x256xf32>,
    %c0_13 = arith.constant 0 : index
    %c16 = arith.constant 16 : index
    %28 = vector.load %arg8[%c0_13, %c16] : memref<4x320xf32, #tpu.memory_space<vmem>>, vector<4x256xf32>
    %c4 = arith.constant 4 : index
    %c0_14 = arith.constant 0 : index
    %29 = vector.load %arg9[%c4, %c0_14] : memref<36x256xf32, #tpu.memory_space<vmem>>, vector<4x256xf32>
    tpu.vector_store %arg9[%c4, %c0_14], %28 {strides = array<i32>} : memref<36x256xf32, #tpu.memory_space<vmem>>, vector<4x256xf32>,
    %c0_15 = arith.constant 0 : index
    %c17 = arith.constant 17 : index
    %30 = vector.load %arg8[%c0_15, %c17] : memref<4x320xf32, #tpu.memory_space<vmem>>, vector<4x256xf32>
    %c14_i32 = arith.constant 14 : i32
    %31 = vector.broadcast %c14_i32 : i32 to vector<4x256xi32>
    %32 = arith.cmpi sle, %21, %31 : vector<4x256xi32>
    %cst_16 = arith.constant 0.000000e+00 : f32
    %33 = vector.broadcast %cst_16 : f32 to vector<4x256xf32>
    %34 = arith.select %32, %30, %33 : vector<4x256xi1>, vector<4x256xf32>
    %c8 = arith.constant 8 : index
    %c0_17 = arith.constant 0 : index
    %35 = vector.load %arg9[%c8, %c0_17] : memref<36x256xf32, #tpu.memory_space<vmem>>, vector<4x256xf32>
    tpu.vector_store %arg9[%c8, %c0_17], %34 {strides = array<i32>} : memref<36x256xf32, #tpu.memory_space<vmem>>, vector<4x256xf32>,
    %c0_18 = arith.constant 0 : index
    %c31 = arith.constant 31 : index
    %36 = vector.load %arg8[%c0_18, %c31] : memref<4x320xf32, #tpu.memory_space<vmem>>, vector<4x256xf32>
    %c1_i32_19 = arith.constant 1 : i32
    %37 = vector.broadcast %c1_i32_19 : i32 to vector<4x256xi32>
    %38 = arith.cmpi sge, %21, %37 : vector<4x256xi32>
    %cst_20 = arith.constant 0.000000e+00 : f32
    %39 = vector.broadcast %cst_20 : f32 to vector<4x256xf32>
    %40 = arith.select %38, %36, %39 : vector<4x256xi1>, vector<4x256xf32>
    %c12 = arith.constant 12 : index
    %c0_21 = arith.constant 0 : index
    %41 = vector.load %arg9[%c12, %c0_21] : memref<36x256xf32, #tpu.memory_space<vmem>>, vector<4x256xf32>
    tpu.vector_store %arg9[%c12, %c0_21], %40 {strides = array<i32>} : memref<36x256xf32, #tpu.memory_space<vmem>>, vector<4x256xf32>,
    %c0_22 = arith.constant 0 : index
    %c32_23 = arith.constant 32 : index
    %42 = vector.load %arg8[%c0_22, %c32_23] : memref<4x320xf32, #tpu.memory_space<vmem>>, vector<4x256xf32>
    %c16_24 = arith.constant 16 : index
    %c0_25 = arith.constant 0 : index
    %43 = vector.load %arg9[%c16_24, %c0_25] : memref<36x256xf32, #tpu.memory_space<vmem>>, vector<4x256xf32>
    tpu.vector_store %arg9[%c16_24, %c0_25], %42 {strides = array<i32>} : memref<36x256xf32, #tpu.memory_space<vmem>>, vector<4x256xf32>,
    %c0_26 = arith.constant 0 : index
    %c33 = arith.constant 33 : index
    %44 = vector.load %arg8[%c0_26, %c33] : memref<4x320xf32, #tpu.memory_space<vmem>>, vector<4x256xf32>
    %c14_i32_27 = arith.constant 14 : i32
    %45 = vector.broadcast %c14_i32_27 : i32 to vector<4x256xi32>
    %46 = arith.cmpi sle, %21, %45 : vector<4x256xi32>
    %cst_28 = arith.constant 0.000000e+00 : f32
    %47 = vector.broadcast %cst_28 : f32 to vector<4x256xf32>
    %48 = arith.select %46, %44, %47 : vector<4x256xi1>, vector<4x256xf32>
    %c20 = arith.constant 20 : index
    %c0_29 = arith.constant 0 : index
    %49 = vector.load %arg9[%c20, %c0_29] : memref<36x256xf32, #tpu.memory_space<vmem>>, vector<4x256xf32>
    tpu.vector_store %arg9[%c20, %c0_29], %48 {strides = array<i32>} : memref<36x256xf32, #tpu.memory_space<vmem>>, vector<4x256xf32>,
    %c0_30 = arith.constant 0 : index
    %c47 = arith.constant 47 : index
    %50 = vector.load %arg8[%c0_30, %c47] : memref<4x320xf32, #tpu.memory_space<vmem>>, vector<4x256xf32>
    %c1_i32_31 = arith.constant 1 : i32
    %51 = vector.broadcast %c1_i32_31 : i32 to vector<4x256xi32>
    %52 = arith.cmpi sge, %21, %51 : vector<4x256xi32>
    %cst_32 = arith.constant 0.000000e+00 : f32
    %53 = vector.broadcast %cst_32 : f32 to vector<4x256xf32>
    %54 = arith.select %52, %50, %53 : vector<4x256xi1>, vector<4x256xf32>
    %c24 = arith.constant 24 : index
    %c0_33 = arith.constant 0 : index
    %55 = vector.load %arg9[%c24, %c0_33] : memref<36x256xf32, #tpu.memory_space<vmem>>, vector<4x256xf32>
    tpu.vector_store %arg9[%c24, %c0_33], %54 {strides = array<i32>} : memref<36x256xf32, #tpu.memory_space<vmem>>, vector<4x256xf32>,
    %c0_34 = arith.constant 0 : index
    %c48 = arith.constant 48 : index
    %56 = vector.load %arg8[%c0_34, %c48] : memref<4x320xf32, #tpu.memory_space<vmem>>, vector<4x256xf32>
    %c28 = arith.constant 28 : index
    %c0_35 = arith.constant 0 : index
    %57 = vector.load %arg9[%c28, %c0_35] : memref<36x256xf32, #tpu.memory_space<vmem>>, vector<4x256xf32>
    tpu.vector_store %arg9[%c28, %c0_35], %56 {strides = array<i32>} : memref<36x256xf32, #tpu.memory_space<vmem>>, vector<4x256xf32>,
    %c0_36 = arith.constant 0 : index
    %c49 = arith.constant 49 : index
    %58 = vector.load %arg8[%c0_36, %c49] : memref<4x320xf32, #tpu.memory_space<vmem>>, vector<4x256xf32>
    %c14_i32_37 = arith.constant 14 : i32
    %59 = vector.broadcast %c14_i32_37 : i32 to vector<4x256xi32>
    %60 = arith.cmpi sle, %21, %59 : vector<4x256xi32>
    %cst_38 = arith.constant 0.000000e+00 : f32
    %61 = vector.broadcast %cst_38 : f32 to vector<4x256xf32>
    %62 = arith.select %60, %58, %61 : vector<4x256xi1>, vector<4x256xf32>
    %c32_39 = arith.constant 32 : index
    %c0_40 = arith.constant 0 : index
    %63 = vector.load %arg9[%c32_39, %c0_40] : memref<36x256xf32, #tpu.memory_space<vmem>>, vector<4x256xf32>
    tpu.vector_store %arg9[%c32_39, %c0_40], %62 {strides = array<i32>} : memref<36x256xf32, #tpu.memory_space<vmem>>, vector<4x256xf32>,
    %c0_41 = arith.constant 0 : index
    %c0_42 = arith.constant 0 : index
    %64 = vector.load %arg3[%c0_41, %c0_42] : memref<8x36xf32, #tpu.memory_space<vmem>>, vector<8x36xf32>
    %c0_43 = arith.constant 0 : index
    %c0_44 = arith.constant 0 : index
    %65 = vector.load %arg9[%c0_43, %c0_44] : memref<36x256xf32, #tpu.memory_space<vmem>>, vector<36x256xf32>
    %cst_45 = arith.constant dense<0.000000e+00> : vector<8x256xf32>
    %66 = tpu.matmul %64, %65, %cst_45 {dimension_numbers = #tpu.dot_dimension_numbers<[1], [0], [0], [1], [0, 0, 1, 1], [], []>} : vector<8x36xf32>, vector<36x256xf32>, vector<8x256xf32> -> vector<8x256xf32>
    %c0_46 = arith.constant 0 : index
    %c0_47 = arith.constant 0 : index
    %67 = vector.load %arg4[%c0_46, %c0_47] : memref<8x1xf32, #tpu.memory_space<vmem>>, vector<8x1xf32>
    %68 = vector.broadcast %67 : vector<8x1xf32> to vector<8x256xf32>
    %69 = arith.addf %66, %68 : vector<8x256xf32>
    %cst_48 = arith.constant 0.000000e+00 : f32
    %70 = vector.broadcast %cst_48 : f32 to vector<8x256xf32>
    %71 = arith.maximumf %69, %70 : vector<8x256xf32>
    %c0_49 = arith.constant 0 : index
    %c0_50 = arith.constant 0 : index
    %72 = vector.load %arg5[%c0_49, %c0_50] : memref<256x1024xf32, #tpu.memory_space<vmem>>, vector<256x1024xf32>
    %cst_51 = arith.constant dense<0.000000e+00> : vector<8x1024xf32>
    %73 = tpu.matmul %71, %72, %cst_51 {dimension_numbers = #tpu.dot_dimension_numbers<[1], [0], [0], [1], [0, 0, 1, 1], [], []>} : vector<8x256xf32>, vector<256x1024xf32>, vector<8x1024xf32> -> vector<8x1024xf32>
    %c0_52 = arith.constant 0 : index
    %c0_53 = arith.constant 0 : index
    %74 = vector.load %arg6[%c0_52, %c0_53] : memref<2x128xf32, #tpu.memory_space<vmem>>, vector<1x128xf32>
    %75 = arith.index_cast %arg0 : i32 to index
    %76 = memref.load %arg1[%75] : memref<2xf32, #tpu.memory_space<smem>>
    %c1 = arith.constant 1 : index
    %c0_54 = arith.constant 0 : index
    %77 = vector.load %arg6[%c1, %c0_54] : memref<2x128xf32, #tpu.memory_space<vmem>>, vector<1x128xf32>
    %78 = vector.broadcast %76 : f32 to vector<1x128xf32>
    %79 = arith.mulf %78, %77 : vector<1x128xf32>
    %80 = arith.addf %74, %79 : vector<1x128xf32>
    %81 = vector.extract_strided_slice %73 {offsets = [0, 0], sizes = [1, 128], strides = [1, 1]} : vector<8x1024xf32> to vector<1x128xf32>
    %82 = arith.addf %80, %81 : vector<1x128xf32>
    %83 = vector.extract_strided_slice %73 {offsets = [1, 128], sizes = [1, 128], strides = [1, 1]} : vector<8x1024xf32> to vector<1x128xf32>
    %84 = arith.addf %82, %83 : vector<1x128xf32>
    %85 = vector.extract_strided_slice %73 {offsets = [2, 256], sizes = [1, 128], strides = [1, 1]} : vector<8x1024xf32> to vector<1x128xf32>
    %86 = arith.addf %84, %85 : vector<1x128xf32>
    %87 = vector.extract_strided_slice %73 {offsets = [3, 384], sizes = [1, 128], strides = [1, 1]} : vector<8x1024xf32> to vector<1x128xf32>
    %88 = arith.addf %86, %87 : vector<1x128xf32>
    %89 = vector.extract_strided_slice %73 {offsets = [4, 512], sizes = [1, 128], strides = [1, 1]} : vector<8x1024xf32> to vector<1x128xf32>
    %90 = arith.addf %88, %89 : vector<1x128xf32>
    %91 = vector.extract_strided_slice %73 {offsets = [5, 640], sizes = [1, 128], strides = [1, 1]} : vector<8x1024xf32> to vector<1x128xf32>
    %92 = arith.addf %90, %91 : vector<1x128xf32>
    %93 = vector.extract_strided_slice %73 {offsets = [6, 768], sizes = [1, 128], strides = [1, 1]} : vector<8x1024xf32> to vector<1x128xf32>
    %94 = arith.addf %92, %93 : vector<1x128xf32>
    %95 = vector.extract_strided_slice %73 {offsets = [7, 896], sizes = [1, 128], strides = [1, 1]} : vector<8x1024xf32> to vector<1x128xf32>
    %96 = arith.addf %94, %95 : vector<1x128xf32>
    %c0_55 = arith.constant 0 : index
    %c0_56 = arith.constant 0 : index
    %c0_57 = arith.constant 0 : index
    %97 = vector.load %arg7[%c0_55, %c0_56, %c0_57] : memref<1x1x128xf32, #tpu.memory_space<vmem>>, vector<1x1x128xf32>
    %98 = vector.shape_cast %97 : vector<1x1x128xf32> to vector<1x128xf32>
    %99 = vector.shape_cast %96 : vector<1x128xf32> to vector<1x1x128xf32>
    tpu.vector_store %arg7[%c0_55, %c0_56, %c0_57], %99 {strides = array<i32>} : memref<1x1x128xf32, #tpu.memory_space<vmem>>, vector<1x1x128xf32>,
    return
  }
  func.func @transform_0(%arg0: i32) -> i32 {
    %c0_i32 = arith.constant 0 : i32
    %c0_i32_0 = arith.constant 0 : i32
    return %c0_i32 : i32
  }
  func.func @transform_1(%arg0: i32) -> (i32, i32, i32) {
    %c0_i32 = arith.constant 0 : i32
    %c0_i32_0 = arith.constant 0 : i32
    %c0_i32_1 = arith.constant 0 : i32
    return %arg0, %c0_i32, %c0_i32_0 : i32, i32, i32
  }
  func.func @transform_2(%arg0: i32) -> (i32, i32) {
    %c0_i32 = arith.constant 0 : i32
    %c0_i32_0 = arith.constant 0 : i32
    %c0_i32_1 = arith.constant 0 : i32
    return %c0_i32, %c0_i32_0 : i32, i32
  }
  func.func @transform_3(%arg0: i32) -> (i32, i32) {
    %c0_i32 = arith.constant 0 : i32
    %c0_i32_0 = arith.constant 0 : i32
    %c0_i32_1 = arith.constant 0 : i32
    return %c0_i32, %c0_i32_0 : i32, i32
  }
  func.func @transform_4(%arg0: i32) -> (i32, i32) {
    %c0_i32 = arith.constant 0 : i32
    %c0_i32_0 = arith.constant 0 : i32
    %c0_i32_1 = arith.constant 0 : i32
    return %c0_i32, %c0_i32_0 : i32, i32
  }
  func.func @transform_5(%arg0: i32) -> (i32, i32) {
    %c0_i32 = arith.constant 0 : i32
    %c0_i32_0 = arith.constant 0 : i32
    %c0_i32_1 = arith.constant 0 : i32
    return %c0_i32, %c0_i32_0 : i32, i32
  }
  func.func @transform_6(%arg0: i32) -> (i32, i32, i32) {
    %c0_i32 = arith.constant 0 : i32
    %c0_i32_0 = arith.constant 0 : i32
    %c0_i32_1 = arith.constant 0 : i32
    return %arg0, %c0_i32, %c0_i32_0 : i32, i32, i32
  }
}

</mosaic_0001>

<llo_original>
// kernel: tpu_custom_call.1
$region0: #{tpu_custom_call.1}
  #allocation0 [shape = 'u32[]', space=smem, size = 0x4, offset = 0x4, fixed_abs, tag = 'smem constant byte address 0x4 - core index']
  #allocation1 [shape = 'u32[144,128]{1,0:T(1,128)}', space=vmem, size = 0x12000, scoped, tag = 'internal scratch']
  #allocation2 [shape = 'f32[4,320]{1,0:T(4,128)}', space=vmem, size = 0x1800, scoped, tag = 'scratch operand']
  #allocation3 [shape = 'f32[36,256]{1,0:T(8,128)}', space=vmem, size = 0xa000, scoped, tag = 'scratch operand']
  %s0 = inlined_call_operand.vmem [shape: f32[2], index: 0, kind: input, shape index: {}]
  %s1 = inlined_call_operand.hbm [shape: f32[2,4,256], index: 1, kind: input, shape index: {}]
  %s2 = inlined_call_operand.vmem [shape: f32[8,36], index: 2, kind: input, shape index: {}]
  %s3 = inlined_call_operand.vmem [shape: f32[8,1], index: 3, kind: input, shape index: {}]
  %s4 = inlined_call_operand.hbm [shape: f32[256,1024], index: 4, kind: input, shape index: {}]
  %s5 = inlined_call_operand.vmem [shape: f32[2,128], index: 5, kind: input, shape index: {}]
  %s6 = inlined_call_operand.hbm [shape: f32[2,1,128], index: 6, kind: output, shape index: {}]
  %s7 = sld [smem:[#allocation0]]
  $region69: #{tpu_custom_call.1} parent=0
    _
  %s9 = ssub.s32 1, %s7
  %s10 = scalar_select 0, %s9, %s7
  $region1: #{tpu_custom_call.1} parent=0
    #allocation4 [shape = 'u8[512]{0}', space=smem, size = 0x200, scoped, tag = 'input window, operand 0, single buffered']
    #allocation5 [shape = 's32[2]{0}', space=sflag, size = 0x8, scoped, tag = 'scoped memory for tpu_custom_call.1']
    #allocation6 [shape = 's32[2]{0}', space=sflag, size = 0x8, scoped, tag = 'scoped memory for tpu_custom_call.1']
    #allocation7 [shape = 's32[2]{0}', space=sflag, size = 0x8, scoped, tag = 'scoped memory for tpu_custom_call.1']
    #allocation8 [shape = 'u8[8192]{0}', space=vmem, size = 0x2000, scoped, tag = 'input window, operand 1']
    #allocation9 [shape = 'u8[1048576]{0}', space=vmem, size = 0x100000, scoped, tag = 'input window, operand 4, single buffered']
    #allocation10 [shape = 's32[1]{0}', space=sflag, size = 0x4, scoped, tag = 'scoped memory for tpu_custom_call.1']
    #allocation11 [shape = 'u8[1024]{0}', space=vmem, size = 0x400, scoped, tag = 'output window, operand 0']
    %11 = vsyncpa [#allocation7], 0
    %12 = vsyncpa [#allocation5], 0
    %s13 = scalar_lea.sflag [#allocation5], 1
    %14 = vsyncpa %s13, 0
    %15 = vsyncpa [#allocation10], 0
    %16 = vsyncpa [#allocation6], 0
    %s17 = scalar_lea.sflag [#allocation6], 1
    %18 = vsyncpa %s17, 0
    loop: start=0, step=1, limit=4
    $region2: #{tpu_custom_call.1} parent=1 // loop_pre_header
      _
    $region3: #{tpu_custom_call.1} parent=1 // loop_header
      %s20 = sphi 0, %s24
      %p21 = scmp.ge.s32.totalorder %s20, 4
      %s28 = sphi 0, %s28
      %s30 = sphi 0, %s28
      %s31 = sphi 0, %s30
      %s45 = sphi 0, %s31
      %s51 = sphi 0, %s53
      %s54 = sphi 0, %s51
      %s55 = sphi 0, %s54
      %s71 = sphi 0, %s55
      %s75 = sphi 0, %s75
      %s77 = sphi 0, %s75
      %s78 = sphi 0, %s77
      %s92 = sphi 0, %s78
      %s96 = sphi 0, %s96
      %s98 = sphi 0, %s96
      %s99 = sphi 0, %s98
      %s113 = sphi 0, %s99
      %s117 = sphi 0, %s117
      %s119 = sphi 0, %s117
      %s120 = sphi 0, %s119
      %s134 = sphi 0, %s120
      %s138 = sphi 0, %s138
      %s140 = sphi 0, %s138
      %s141 = sphi 0, %s140
      %s155 = sphi 0, %s141
      %s161 = sphi 0, %s163
      %s164 = sphi 0, %s161
      %s165 = sphi 0, %s164
      %s181 = sphi 0, %s165
    $region4: #{tpu_custom_call.1} parent=1 // loop_header_branch
      %23 = sbr.rel (%p21) target = $region8
    $region5: #{tpu_custom_call.1} parent=1 // loop_body
      %s25 = ssub.s32 %s20, 1
      %s26 = ssub.s32 %s20, 2
      %s27 = sadd.s32 %s20, 1
      %s29 = sadd.s32 %s28, 1
      %p32 = scmp.eq.s32.totalorder %s20, 1
      %p33 = scmp.ne.s32.totalorder %s28, %s30
      %p34 = scmp.eq.s32.totalorder %s20, 0
      %p35 = por %p33, %p34
      %p36 = scmp.ne.s32.totalorder %s28, %s30
      %p37 = scmp.eq.s32.totalorder %s25, 1
      %p38 = por %p36, %p37
      %p39 = scmp.ne.s32.totalorder %s30, %s31
      %p40 = scmp.eq.s32.totalorder %s25, 0
      %p41 = por %p39, %p40
      %p42 = scmp.ne.s32.totalorder %s30, %s31
      %p43 = scmp.eq.s32.totalorder %s26, 1
      %p44 = por %p42, %p43
      %p46 = scmp.ne.s32.totalorder %s31, %s45
      %p47 = scmp.eq.s32.totalorder %s26, 0
      %p48 = por %p46, %p47
      %s49 = ssub.s32 %s20, %s27
      %p50 = scmp.eq.s32.totalorder %s49, 0
      %s52 = sadd.s32 %s51, 1
      %s53 = scalar_select %p50, %s51, %s52
      %p56 = pneg %p50
      %p57 = scmp.eq.s32.totalorder %s20, 1
      %p58 = por %p56, %p57
      %p59 = scmp.ne.s32.totalorder %s51, %s54
      %p60 = scmp.eq.s32.totalorder %s20, 0
      %p61 = por %p59, %p60
      %p62 = scmp.ne.s32.totalorder %s51, %s54
      %p63 = scmp.eq.s32.totalorder %s25, 1
      %p64 = por %p62, %p63
      %p65 = scmp.ne.s32.totalorder %s54, %s55
      %p66 = scmp.eq.s32.totalorder %s25, 0
      %p67 = por %p65, %p66
      %p68 = scmp.ne.s32.totalorder %s54, %s55
      %p69 = scmp.eq.s32.totalorder %s26, 1
      %p70 = por %p68, %p69
      %p72 = scmp.ne.s32.totalorder %s55, %s71
      %p73 = scmp.eq.s32.totalorder %s26, 0
      %p74 = por %p72, %p73
      %s76 = sadd.s32 %s75, 1
      %p79 = scmp.eq.s32.totalorder %s20, 1
      %p80 = scmp.ne.s32.totalorder %s75, %s77
      %p81 = scmp.eq.s32.totalorder %s20, 0
      %p82 = por %p80, %p81
      %p83 = scmp.ne.s32.totalorder %s75, %s77
      %p84 = scmp.eq.s32.totalorder %s25, 1
      %p85 = por %p83, %p84
      %p86 = scmp.ne.s32.totalorder %s77, %s78
      %p87 = scmp.eq.s32.totalorder %s25, 0
      %p88 = por %p86, %p87
      %p89 = scmp.ne.s32.totalorder %s77, %s78
      %p90 = scmp.eq.s32.totalorder %s26, 1
      %p91 = por %p89, %p90
      %p93 = scmp.ne.s32.totalorder %s78, %s92
      %p94 = scmp.eq.s32.totalorder %s26, 0
      %p95 = por %p93, %p94
      %s97 = sadd.s32 %s96, 1
      %p100 = scmp.eq.s32.totalorder %s20, 1
      %p101 = scmp.ne.s32.totalorder %s96, %s98
      %p102 = scmp.eq.s32.totalorder %s20, 0
      %p103 = por %p101, %p102
      %p104 = scmp.ne.s32.totalorder %s96, %s98
      %p105 = scmp.eq.s32.totalorder %s25, 1
      %p106 = por %p104, %p105
      %p107 = scmp.ne.s32.totalorder %s98, %s99
      %p108 = scmp.eq.s32.totalorder %s25, 0
      %p109 = por %p107, %p108
      %p110 = scmp.ne.s32.totalorder %s98, %s99
      %p111 = scmp.eq.s32.totalorder %s26, 1
      %p112 = por %p110, %p111
      %p114 = scmp.ne.s32.totalorder %s99, %s113
      %p115 = scmp.eq.s32.totalorder %s26, 0
      %p116 = por %p114, %p115
      %s118 = sadd.s32 %s117, 1
      %p121 = scmp.eq.s32.totalorder %s20, 1
      %p122 = scmp.ne.s32.totalorder %s117, %s119
      %p123 = scmp.eq.s32.totalorder %s20, 0
      %p124 = por %p122, %p123
      %p125 = scmp.ne.s32.totalorder %s117, %s119
      %p126 = scmp.eq.s32.totalorder %s25, 1
      %p127 = por %p125, %p126
      %p128 = scmp.ne.s32.totalorder %s119, %s120
      %p129 = scmp.eq.s32.totalorder %s25, 0
      %p130 = por %p128, %p129
      %p131 = scmp.ne.s32.totalorder %s119, %s120
      %p132 = scmp.eq.s32.totalorder %s26, 1
      %p133 = por %p131, %p132
      %p135 = scmp.ne.s32.totalorder %s120, %s134
      %p136 = scmp.eq.s32.totalorder %s26, 0
      %p137 = por %p135, %p136
      %s139 = sadd.s32 %s138, 1
      %p142 = scmp.eq.s32.totalorder %s20, 1
      %p143 = scmp.ne.s32.totalorder %s138, %s140
      %p144 = scmp.eq.s32.totalorder %s20, 0
      %p145 = por %p143, %p144
      %p146 = scmp.ne.s32.totalorder %s138, %s140
      %p147 = scmp.eq.s32.totalorder %s25, 1
      %p148 = por %p146, %p147
      %p149 = scmp.ne.s32.totalorder %s140, %s141
      %p150 = scmp.eq.s32.totalorder %s25, 0
      %p151 = por %p149, %p150
      %p152 = scmp.ne.s32.totalorder %s140, %s141
      %p153 = scmp.eq.s32.totalorder %s26, 1
      %p154 = por %p152, %p153
      %p156 = scmp.ne.s32.totalorder %s141, %s155
      %p157 = scmp.eq.s32.totalorder %s26, 0
      %p158 = por %p156, %p157
      %s159 = ssub.s32 %s20, %s27
      %p160 = scmp.eq.s32.totalorder %s159, 0
      %s162 = sadd.s32 %s161, 1
      %s163 = scalar_select %p160, %s161, %s162
      %p166 = pneg %p160
      %p167 = scmp.eq.s32.totalorder %s20, 1
      %p168 = por %p166, %p167
      %p169 = scmp.ne.s32.totalorder %s161, %s164
      %p170 = scmp.eq.s32.totalorder %s20, 0
      %p171 = por %p169, %p170
      %p172 = scmp.ne.s32.totalorder %s161, %s164
      %p173 = scmp.eq.s32.totalorder %s25, 1
      %p174 = por %p172, %p173
      %p175 = scmp.ne.s32.totalorder %s164, %s165
      %p176 = scmp.eq.s32.totalorder %s25, 0
      %p177 = por %p175, %p176
      %p178 = scmp.ne.s32.totalorder %s164, %s165
      %p179 = scmp.eq.s32.totalorder %s26, 1
      %p180 = por %p178, %p179
      %p182 = scmp.ne.s32.totalorder %s165, %s181
      %p183 = scmp.eq.s32.totalorder %s26, 0
      %p184 = por %p182, %p183
      %p185 = scmp.le.s32.totalorder 1, %s20
      %p186 = scmp.lt.s32.totalorder %s20, 3
      %p187 = pnand %p185, %p186
      %p188 = pneg %p187
      // Predicated region
      $region9: #{tpu_custom_call.1} parent=5 // pred_check
        _
      $region10: #{tpu_custom_call.1} parent=5 // pred_check_branch
        %190 = sbr.rel (%p187) target = $region12
      $region11: #{tpu_custom_call.1} parent=5 // pred_region
        %s191 = ssub.s32 %s20, 1
        // Predicated region
        $region13: #{tpu_custom_call.1} parent=11 // pred_check
          %p192 = pneg %p41
        $region14: #{tpu_custom_call.1} parent=11 // pred_check_branch
          %194 = sbr.rel (%p192) target = $region16
        $region15: #{tpu_custom_call.1} parent=11 // pred_region
          %s196 = ssub.s32 16, 16
          %197 = vsyncadd [#allocation7], %s196
          %s199 = sshll.u32 %s0, 4
          %s200 = int_to_ptr.vmem [resolvable:$true] %s199
          %202 = dma.vmem_to_smem %s200, 16, [#allocation4], [#allocation7]
        $region16: #{tpu_custom_call.1} parent=11 // pred_fallthru
          _
        // Predicated region
        $region17: #{tpu_custom_call.1} parent=11 // pred_check
          %p203 = pneg %p88
        $region18: #{tpu_custom_call.1} parent=11 // pred_check_branch
          %205 = sbr.rel (%p203) target = $region20
        $region19: #{tpu_custom_call.1} parent=11 // pred_region
          _
        $region20: #{tpu_custom_call.1} parent=11 // pred_fallthru
          _
        // Predicated region
        $region21: #{tpu_custom_call.1} parent=11 // pred_check
          %p206 = pneg %p109
        $region22: #{tpu_custom_call.1} parent=11 // pred_check_branch
          %208 = sbr.rel (%p206) target = $region24
        $region23: #{tpu_custom_call.1} parent=11 // pred_region
          _
        $region24: #{tpu_custom_call.1} parent=11 // pred_fallthru
          _
        // Predicated region
        $region25: #{tpu_custom_call.1} parent=11 // pred_check
          %p209 = pneg %p130
        $region26: #{tpu_custom_call.1} parent=11 // pred_check_branch
          %211 = sbr.rel (%p209) target = $region28
        $region27: #{tpu_custom_call.1} parent=11 // pred_region
          %s213 = ssub.s32 32768, 32768
          %214 = vsyncadd [#allocation10], %s213
          %s215 = sshll.u32 [#allocation9], 4
          %s216 = int_to_ptr.vmem [resolvable:$true] %s215
          %221 = dma.hbm_to_vmem [thread:$0]  %s4, 32768, %s216, [#allocation10], 1024, 1024, 64
        $region28: #{tpu_custom_call.1} parent=11 // pred_fallthru
          _
        // Predicated region
        $region29: #{tpu_custom_call.1} parent=11 // pred_check
          %p222 = pneg %p151
        $region30: #{tpu_custom_call.1} parent=11 // pred_check_branch
          %224 = sbr.rel (%p222) target = $region32
        $region31: #{tpu_custom_call.1} parent=11 // pred_region
          _
        $region32: #{tpu_custom_call.1} parent=11 // pred_fallthru
          _
      $region12: #{tpu_custom_call.1} parent=5 // pred_fallthru
        _
      %p225 = scmp.lt.s32.totalorder %s20, 2
      // Predicated region
      $region33: #{tpu_custom_call.1} parent=5 // pred_check
        %p226 = pneg %p225
      $region34: #{tpu_custom_call.1} parent=5 // pred_check_branch
        %228 = sbr.rel (%p226) target = $region36
      $region35: #{tpu_custom_call.1} parent=5 // pred_region
        // Predicated region
        $region37: #{tpu_custom_call.1} parent=35 // pred_check
          %p229 = pneg %p61
        $region38: #{tpu_custom_call.1} parent=35 // pred_check_branch
          %231 = sbr.rel (%p229) target = $region40
        $region39: #{tpu_custom_call.1} parent=35 // pred_region
          %s232 = sand.u32 %s51, 1
          %s233 = scalar_lea.sflag [#allocation5], %s232
          %s234 = sand.u32 %s51, 1
          %s235 = smul.addr %s234, 8
          %s236 = scalar_lea.vmem [#allocation8], %s235
          %s238 = ssub.s32 128, 128
          %239 = vsyncadd %s233, %s238
          %s240 = smul.addr %s20, 2
          %s241 = smul.addr %s240, 64
          %s242 = scalar_lea.hbm %s1, %s241
          %s244 = sshll.u32 %s236, 4
          %s245 = int_to_ptr.vmem [resolvable:$true] %s244
          %247 = dma.hbm_to_vmem [thread:$0]  %s242, 128, %s245, %s233
        $region40: #{tpu_custom_call.1} parent=35 // pred_fallthru
          _
      $region36: #{tpu_custom_call.1} parent=5 // pred_fallthru
        _
      %p248 = scmp.le.s32.totalorder 1, %s20
      %p249 = scmp.lt.s32.totalorder %s20, 3
      %p250 = pnand %p248, %p249
      %p251 = pneg %p250
      // Predicated region
      $region41: #{tpu_custom_call.1} parent=5 // pred_check
        _
      $region42: #{tpu_custom_call.1} parent=5 // pred_check_branch
        %253 = sbr.rel (%p250) target = $region44
      $region43: #{tpu_custom_call.1} parent=5 // pred_region
        %s254 = ssub.s32 %s20, 1
        // Predicated region
        $region45: #{tpu_custom_call.1} parent=43 // pred_check
          %p255 = pneg %p41
        $region46: #{tpu_custom_call.1} parent=43 // pred_check_branch
          %257 = sbr.rel (%p255) target = $region48
        $region47: #{tpu_custom_call.1} parent=43 // pred_region
          %258 = dma.done [#allocation7], 16
        $region48: #{tpu_custom_call.1} parent=43 // pred_fallthru
          _
        %s259 = sand.u32 %s54, 1
        %s260 = scalar_lea.sflag [#allocation5], %s259
        %s261 = sand.u32 %s54, 1
        %s262 = smul.addr %s261, 8
        %s263 = scalar_lea.vmem [#allocation8], %s262
        // Predicated region
        $region49: #{tpu_custom_call.1} parent=43 // pred_check
          %p264 = pneg %p67
        $region50: #{tpu_custom_call.1} parent=43 // pred_check_branch
          %266 = sbr.rel (%p264) target = $region52
        $region51: #{tpu_custom_call.1} parent=43 // pred_region
          %267 = dma.done %s260, 128
        $region52: #{tpu_custom_call.1} parent=43 // pred_fallthru
          _
        // Predicated region
        $region53: #{tpu_custom_call.1} parent=43 // pred_check
          %p268 = pneg %p130
        $region54: #{tpu_custom_call.1} parent=43 // pred_check_branch
          %270 = sbr.rel (%p268) target = $region56
        $region55: #{tpu_custom_call.1} parent=43 // pred_region
          %271 = dma.done [#allocation10], 32768
        $region56: #{tpu_custom_call.1} parent=43 // pred_fallthru
          _
        %272 = sfence
        %p273 = pneg %p41
        %p274 = pneg %p38
        %s275 = sand.u32 %s54, 1
        %s276 = scalar_lea.sflag [#allocation5], %s275
        %s277 = sand.u32 %s54, 1
        %s278 = smul.addr %s277, 8
        %s279 = scalar_lea.vmem [#allocation8], %s278
        %p280 = pneg %p67
        %p281 = pneg %p64
        %p282 = pneg %p88
        %p283 = pneg %p85
        %p284 = pneg %p109
        %p285 = pneg %p106
        %p286 = pneg %p130
        %p287 = pneg %p127
        %p288 = pneg %p151
        %p289 = pneg %p148
        %p290 = pneg %p177
        %p291 = pneg %p174
        %s292 = sand.u32 %s164, 1
        %s293 = scalar_lea.sflag [#allocation6], %s292
        %s294 = sand.u32 %s164, 1
        %s295 = scalar_lea.vmem [#allocation11], %s294
        %296 = vst [vmem:[#allocation2] sm:$0xff] 0.0
        %vm297 = vcmask 519168
        %298 = vst.msk [vmem:[#allocation2 + $0x8] sm:$0xf] %vm297, 0.0
        %v299 = vld [vmem:[%s263] sm:$0xff]
        %301 = vrot.lane.b32.xlu0 %v299, 32
        %v302 = vpop.permute.xlu0 %301
        %v303 = vrot.slane %v302, 4
        %vm304 = vcmask 261120
        %v305 = vsel %vm304, %v303, %v302
        %vm308 = vcmask 1043712
        %vm309 = vcmask 1047556
        %vm310 = vmor %vm309, %vm308
        %311 = vst.msk [vmem:[#allocation2] sm:$0xff] %vm310, %v305
        %vm312 = vcmask 257024
        %313 = vst.msk [vmem:[#allocation2 + $0x8] sm:$0xf] %vm312, %v303
        %v314 = vlaneseq
        %v315 = vand.u32 %v314, 127
        %v316 = vadd.s32 %v315, 128
        %vm317 = vcmp.lt.s32.totalorder %v315, 0
        %v318 = vsub.s32 0, %v315
        %v319 = vsel %vm317, %v318, %v315
        %v320 = vshrl.u32 %v319, 4
        %v321 = vand.u32 %v319, 15
        %v322 = vsub.s32 0, %v321
        %v323 = vsel %vm317, %v322, %v321
        %vm324 = vcmp.lt.s32.totalorder %v316, 0
        %v325 = vsub.s32 0, %v316
        %v326 = vsel %vm324, %v325, %v316
        %v327 = vshrl.u32 %v326, 4
        %v328 = vand.u32 %v326, 15
        %v329 = vsub.s32 0, %v328
        %v330 = vsel %vm324, %v329, %v328
        %vm331 = vcmp.ne.s32.totalorder %v323, 0
        %vm332 = vcmp.ne.s32.totalorder %v330, 0
        %vm333 = vcmp.lt.s32.totalorder %v323, 0
        %vm334 = vcmp.lt.s32.totalorder %v330, 0
        %vm335 = vmand %vm333, %vm331
        %vm336 = vmand %vm334, %vm332
        %v337 = vadd.s32 %v323, 16
        %v338 = vadd.s32 %v330, 16
        %v339 = vsel %vm335, %v337, %v323
        %v340 = vsel %vm336, %v338, %v330
        %v341 = vld [vmem:[#allocation2] sm:$0xff]
        %v342 = vld [vmem:[#allocation2 + $0x8] sm:$0xf]
        %vm343 = vcmp.ge.s32.totalorder %v339, 1
        %vm344 = vcmp.ge.s32.totalorder %v340, 1
        %v347 = vcombine.high %v341, %v341
        %348 = vrot.lane.b32.xlu0 %v341, 113
        %v349 = vpop.permute.xlu0 %348
        %350 = vrot.lane.b32.xlu0 %v347, 113
        %v351 = vpop.permute.xlu0 %350
        %352 = vrot.lane.b32.xlu0 %v342, 113
        %v353 = vpop.permute.xlu0 %352
        %vm354 = vcmask 924672
        %v355 = vsel %vm354, %v349, %v351
        %v356 = vsel %vm354, %v351, %v353
        %v359 = vsel %vm343, %v355, 0.0
        %v360 = vsel %vm344, %v356, 0.0
        %361 = vst [vmem:[#allocation3] sm:$0xf] %v359
        %362 = vst [vmem:[#allocation3 + $0x8] sm:$0xf] %v360
        %v363 = vld [vmem:[#allocation2] sm:$0xff]
        %v364 = vld [vmem:[#allocation2 + $0x8] sm:$0xf]
        %v367 = vcombine.low %v363, %v363
        %v368 = vcombine.low %v364, %v364
        %369 = vrot.lane.b32.xlu0 %v367, 112
        %v370 = vpop.permute.xlu0 %369
        %371 = vrot.lane.b32.xlu0 %v363, 112
        %v372 = vpop.permute.xlu0 %371
        %373 = vrot.lane.b32.xlu0 %v368, 112
        %v374 = vpop.permute.xlu0 %373
        %vm375 = vcmask 916480
        %v376 = vsel %vm375, %v370, %v372
        %v377 = vsel %vm375, %v372, %v374
        %380 = vst [vmem:[#allocation3] sm:$0xf0] %v376
        %381 = vst [vmem:[#allocation3 + $0x8] sm:$0xf0] %v377
        %v382 = vld [vmem:[#allocation2] sm:$0xff]
        %v383 = vld [vmem:[#allocation2 + $0x8] sm:$0xf]
        %vm384 = vcmp.le.s32.totalorder %v339, 14
        %vm385 = vcmp.le.s32.totalorder %v340, 14
        %v388 = vcombine.high %v382, %v382
        %389 = vrot.lane.b32.xlu0 %v382, 111
        %v390 = vpop.permute.xlu0 %389
        %391 = vrot.lane.b32.xlu0 %v388, 111
        %v392 = vpop.permute.xlu0 %391
        %393 = vrot.lane.b32.xlu0 %v383, 111
        %v394 = vpop.permute.xlu0 %393
        %vm395 = vcmask 908288
        %v396 = vsel %vm395, %v390, %v392
        %v397 = vsel %vm395, %v392, %v394
        %v400 = vsel %vm384, %v396, 0.0
        %v401 = vsel %vm385, %v397, 0.0
        %402 = vst [vmem:[#allocation3 + $0x10] sm:$0xf] %v400
        %403 = vst [vmem:[#allocation3 + $0x18] sm:$0xf] %v401
        %v404 = vld [vmem:[#allocation2] sm:$0xff]
        %v405 = vld [vmem:[#allocation2 + $0x8] sm:$0xf]
        %v408 = vcombine.high %v404, %v404
        %409 = vrot.lane.b32.xlu0 %v404, 97
        %v410 = vpop.permute.xlu0 %409
        %411 = vrot.lane.b32.xlu0 %v408, 97
        %v412 = vpop.permute.xlu0 %411
        %413 = vrot.lane.b32.xlu0 %v405, 97
        %v414 = vpop.permute.xlu0 %413
        %vm415 = vcmask 793600
        %v416 = vsel %vm415, %v410, %v412
        %v417 = vsel %vm415, %v412, %v414
        %v420 = vsel %vm343, %v416, 0.0
        %v421 = vsel %vm344, %v417, 0.0
        %v424 = vrot.slane %v420, 4
        %v425 = vrot.slane %v421, 4
        %428 = vst [vmem:[#allocation3 + $0x10] sm:$0xf0] %v424
        %429 = vst [vmem:[#allocation3 + $0x18] sm:$0xf0] %v425
        %v430 = vld [vmem:[#allocation2] sm:$0xff]
        %v431 = vld [vmem:[#allocation2 + $0x8] sm:$0xf]
        %v434 = vcombine.high %v430, %v430
        %435 = vrot.lane.b32.xlu0 %v430, 96
        %v436 = vpop.permute.xlu0 %435
        %437 = vrot.lane.b32.xlu0 %v434, 96
        %v438 = vpop.permute.xlu0 %437
        %439 = vrot.lane.b32.xlu0 %v431, 96
        %v440 = vpop.permute.xlu0 %439
        %vm441 = vcmask 785408
        %v442 = vsel %vm441, %v436, %v438
        %v443 = vsel %vm441, %v438, %v440
        %446 = vst [vmem:[#allocation3 + $0x20] sm:$0xf] %v442
        %447 = vst [vmem:[#allocation3 + $0x28] sm:$0xf] %v443
        %v448 = vld [vmem:[#allocation2] sm:$0xff]
        %v449 = vld [vmem:[#allocation2 + $0x8] sm:$0xf]
        %v452 = vcombine.high %v448, %v448
        %453 = vrot.lane.b32.xlu0 %v448, 95
        %v454 = vpop.permute.xlu0 %453
        %455 = vrot.lane.b32.xlu0 %v452, 95
        %v456 = vpop.permute.xlu0 %455
        %457 = vrot.lane.b32.xlu0 %v449, 95
        %v458 = vpop.permute.xlu0 %457
        %vm459 = vcmask 777216
        %v460 = vsel %vm459, %v454, %v456
        %v461 = vsel %vm459, %v456, %v458
        %v464 = vsel %vm384, %v460, 0.0
        %v465 = vsel %vm385, %v461, 0.0
        %v468 = vrot.slane %v464, 4
        %v469 = vrot.slane %v465, 4
        %472 = vst [vmem:[#allocation3 + $0x20] sm:$0xf0] %v468
        %473 = vst [vmem:[#allocation3 + $0x28] sm:$0xf0] %v469
        %v474 = vld [vmem:[#allocation2] sm:$0xff]
        %v475 = vld [vmem:[#allocation2 + $0x8] sm:$0xf]
        %v478 = vcombine.high %v474, %v474
        %479 = vrot.lane.b32.xlu0 %v474, 81
        %v480 = vpop.permute.xlu0 %479
        %481 = vrot.lane.b32.xlu0 %v478, 81
        %v482 = vpop.permute.xlu0 %481
        %483 = vrot.lane.b32.xlu0 %v475, 81
        %v484 = vpop.permute.xlu0 %483
        %vm485 = vcmask 662528
        %v486 = vsel %vm485, %v480, %v482
        %v487 = vsel %vm485, %v482, %v484
        %v490 = vsel %vm343, %v486, 0.0
        %v491 = vsel %vm344, %v487, 0.0
        %492 = vst [vmem:[#allocation3 + $0x30] sm:$0xf] %v490
        %493 = vst [vmem:[#allocation3 + $0x38] sm:$0xf] %v491
        %v494 = vld [vmem:[#allocation2] sm:$0xff]
        %v495 = vld [vmem:[#allocation2 + $0x8] sm:$0xf]
        %v498 = vcombine.low %v494, %v494
        %v499 = vcombine.low %v495, %v495
        %500 = vrot.lane.b32.xlu0 %v498, 80
        %v501 = vpop.permute.xlu0 %500
        %502 = vrot.lane.b32.xlu0 %v494, 80
        %v503 = vpop.permute.xlu0 %502
        %504 = vrot.lane.b32.xlu0 %v499, 80
        %v505 = vpop.permute.xlu0 %504
        %vm506 = vcmask 654336
        %v507 = vsel %vm506, %v501, %v503
        %v508 = vsel %vm506, %v503, %v505
        %511 = vst [vmem:[#allocation3 + $0x30] sm:$0xf0] %v507
        %512 = vst [vmem:[#allocation3 + $0x38] sm:$0xf0] %v508
        %v513 = vld [vmem:[#allocation2] sm:$0xff]
        %v514 = vld [vmem:[#allocation2 + $0x8] sm:$0xf]
        %v517 = vcombine.high %v513, %v513
        %518 = vrot.lane.b32.xlu0 %v513, 79
        %v519 = vpop.permute.xlu0 %518
        %520 = vrot.lane.b32.xlu0 %v517, 79
        %v521 = vpop.permute.xlu0 %520
        %522 = vrot.lane.b32.xlu0 %v514, 79
        %v523 = vpop.permute.xlu0 %522
        %vm524 = vcmask 646144
        %v525 = vsel %vm524, %v519, %v521
        %v526 = vsel %vm524, %v521, %v523
        %v529 = vsel %vm384, %v525, 0.0
        %v530 = vsel %vm385, %v526, 0.0
        %531 = vst [vmem:[#allocation3 + $0x40] sm:$0xf] %v529
        %532 = vst [vmem:[#allocation3 + $0x48] sm:$0xf] %v530
        %v533 = vld [vmem:[%s2] sm:$0xff]
        %v534 = vld [vmem:[#allocation3] sm:$0xff]
        %v535 = vld [vmem:[#allocation3 + $0x8] sm:$0xff]
        %v536 = vld [vmem:[#allocation3 + $0x10] sm:$0xff]
        %v537 = vld [vmem:[#allocation3 + $0x18] sm:$0xff]
        %v538 = vld [vmem:[#allocation3 + $0x20] sm:$0xff]
        %v539 = vld [vmem:[#allocation3 + $0x28] sm:$0xff]
        %v540 = vld [vmem:[#allocation3 + $0x30] sm:$0xff]
        %v541 = vld [vmem:[#allocation3 + $0x38] sm:$0xff]
        %v542 = vld [vmem:[#allocation3 + $0x40] sm:$0xf]
        %v543 = vld [vmem:[#allocation3 + $0x48] sm:$0xf]
        %v544 = vld [vmem:[%s3] sm:$0xff]
        %546 = vset.pattern.permute.xlu0 0
        %547 = vperm.xlu0 %546, %v544
        %v548 = vpop.permute.xlu0 %547
        %vm550 = vcmask 293888
        %v552 = vsel %vm550, %v533, 0
        %vm554 = vcmask 1043456
        %v556 = vsel %vm554, %v542, 0
        %v559 = vsel %vm554, %v543, 0
        %561 = vmatprep.subr.mxu0 0.0
        %562 = vmatpush1.msra.mxu0 0.0
        %563 = vmatprep.subr.mxu0 0.0
        %564 = vmatpush1.msra.mxu0 0.0
        %565 = vmatprep.subr.mxu0 0.0
        %566 = vmatpush1.msra.mxu0 0.0
        %567 = vmatprep.subr.mxu0 0.0
        %568 = vmatpush1.msra.mxu0 0.0
        %569 = vmatprep.subr.mxu0 0.0
        %570 = vmatpush1.msra.mxu0 0.0
        %571 = vmatprep.subr.mxu0 0.0
        %572 = vmatpush1.msra.mxu0 0.0
        %573 = vmatprep.subr.mxu0 0.0
        %574 = vmatpush1.msra.mxu0 0.0
        %575 = vmatprep.subr.mxu0 0.0
        %576 = vmatpush1.msra.mxu0 0.0
        %577 = vmatprep.subr.mxu0 0.0
        %578 = vmatpush1.msra.mxu0 0.0
        %579 = vmatprep.subr.mxu0 0.0
        %580 = vmatpush1.msra.mxu0 0.0
        %581 = vmatprep.subr.mxu0 0.0
        %582 = vmatpush1.msra.mxu0 0.0
        %583 = vmatprep.subr.mxu0 %v559
        %584 = vmatpush1.msra.mxu0 %v556
        %585 = vmatprep.subr.mxu0 %v541
        %586 = vmatpush1.msra.mxu0 %v540
        %587 = vmatprep.subr.mxu0 %v539
        %588 = vmatpush1.msra.mxu0 %v538
        %589 = vmatprep.subr.mxu0 %v537
        %590 = vmatpush1.msra.mxu0 %v536
        %591 = vmatprep.subr.mxu0 %v535
        %592 = vmatpush1.msra.mxu0 %v534
        %593 = vmatprep.subr.mxu0 0.0
        %594 = vmatpush2.msra.mxu0 0.0
        %595 = vmatprep.subr.mxu0 0.0
        %596 = vmatpush2.msra.mxu0 0.0
        %597 = vmatprep.subr.mxu0 0.0
        %598 = vmatpush2.msra.mxu0 0.0
        %599 = vmatprep.subr.mxu0 0.0
        %600 = vmatpush2.msra.mxu0 0.0
        %601 = vmatprep.subr.mxu0 0.0
        %602 = vmatpush2.msra.mxu0 0.0
        %603 = vmatprep.subr.mxu0 0.0
        %604 = vmatpush2.msra.mxu0 0.0
        %605 = vmatprep.subr.mxu0 0.0
        %606 = vmatpush2.msra.mxu0 0.0
        %607 = vmatprep.subr.mxu0 0.0
        %608 = vmatpush2.msra.mxu0 0.0
        %609 = vmatprep.subr.mxu0 0.0
        %610 = vmatpush2.msra.mxu0 0.0
        %611 = vmatprep.subr.mxu0 0.0
        %612 = vmatpush2.msra.mxu0 0.0
        %613 = vmatprep.subr.mxu0 0.0
        %614 = vmatpush2.msra.mxu0 0.0
        %615 = vmatprep.subr.mxu0 0.0
        %616 = vmatpush2.msra.mxu0 0.0
        %617 = vmatprep.subr.mxu0 0.0
        %618 = vmatpush2.msra.mxu0 0.0
        %619 = vmatprep.subr.mxu0 0.0
        %620 = vmatpush2.msra.mxu0 0.0
        %621 = vmatprep.subr.mxu0 0.0
        %622 = vmatpush2.msra.mxu0 0.0
        %623 = vmatprep.subr.mxu0 0.0
        %624 = vmatpush2.msra.mxu0 0.0
        %625 = vmatprep.mubr.f32.mxu0 0.0
        %626 = vmatmul.mubr.f32.gmra.mxu0 %v552
        %v627 = vpop.f32.mrf.mxu0
        %v628 = vadd.f32 %v548, %v627
        %v629 = vpop.f32.mrf.mxu0
        %v630 = vadd.f32 %v548, %v629
        %631 = vdwg.mxu0
        %v632 = vmax.f32 %v628, 0.0
        %v633 = vmax.f32 %v630, 0.0
        %v634 = vld [vmem:[#allocation9] sm:$0xff]
        %v635 = vld [vmem:[#allocation9 + $0x8] sm:$0xff]
        %v636 = vld [vmem:[#allocation9 + $0x10] sm:$0xff]
        %v637 = vld [vmem:[#allocation9 + $0x18] sm:$0xff]
        %v638 = vld [vmem:[#allocation9 + $0x20] sm:$0xff]
        %v639 = vld [vmem:[#allocation9 + $0x28] sm:$0xff]
        %v640 = vld [vmem:[#allocation9 + $0x30] sm:$0xff]
        %v641 = vld [vmem:[#allocation9 + $0x38] sm:$0xff]
        %v642 = vld [vmem:[#allocation9 + $0x40] sm:$0xff]
        %v643 = vld [vmem:[#allocation9 + $0x48] sm:$0xff]
        %v644 = vld [vmem:[#allocation9 + $0x50] sm:$0xff]
        %v645 = vld [vmem:[#allocation9 + $0x58] sm:$0xff]
        %v646 = vld [vmem:[#allocation9 + $0x60] sm:$0xff]
        %v647 = vld [vmem:[#allocation9 + $0x68] sm:$0xff]
        %v648 = vld [vmem:[#allocation9 + $0x70] sm:$0xff]
        %v649 = vld [vmem:[#allocation9 + $0x78] sm:$0xff]
        %v650 = vld [vmem:[#allocation9 + $0x80] sm:$0xff]
        %v651 = vld [vmem:[#allocation9 + $0x88] sm:$0xff]
        %v652 = vld [vmem:[#allocation9 + $0x90] sm:$0xff]
        %v653 = vld [vmem:[#allocation9 + $0x98] sm:$0xff]
        %v654 = vld [vmem:[#allocation9 + $0xa0] sm:$0xff]
        %v655 = vld [vmem:[#allocation9 + $0xa8] sm:$0xff]
        %v656 = vld [vmem:[#allocation9 + $0xb0] sm:$0xff]
        %v657 = vld [vmem:[#allocation9 + $0xb8] sm:$0xff]
        %v658 = vld [vmem:[#allocation9 + $0xc0] sm:$0xff]
        %v659 = vld [vmem:[#allocation9 + $0xc8] sm:$0xff]
        %v660 = vld [vmem:[#allocation9 + $0xd0] sm:$0xff]
        %v661 = vld [vmem:[#allocation9 + $0xd8] sm:$0xff]
        %v662 = vld [vmem:[#allocation9 + $0xe0] sm:$0xff]
        %v663 = vld [vmem:[#allocation9 + $0xe8] sm:$0xff]
        %v664 = vld [vmem:[#allocation9 + $0xf0] sm:$0xff]
        %v665 = vld [vmem:[#allocation9 + $0xf8] sm:$0xff]
        %v666 = vld [vmem:[#allocation9 + $0x100] sm:$0xff]
        %v667 = vld [vmem:[#allocation9 + $0x108] sm:$0xff]
        %v668 = vld [vmem:[#allocation9 + $0x110] sm:$0xff]
        %v669 = vld [vmem:[#allocation9 + $0x118] sm:$0xff]
        %v670 = vld [vmem:[#allocation9 + $0x120] sm:$0xff]
        %v671 = vld [vmem:[#allocation9 + $0x128] sm:$0xff]
        %v672 = vld [vmem:[#allocation9 + $0x130] sm:$0xff]
        %v673 = vld [vmem:[#allocation9 + $0x138] sm:$0xff]
        %v674 = vld [vmem:[#allocation9 + $0x140] sm:$0xff]
        %v675 = vld [vmem:[#allocation9 + $0x148] sm:$0xff]
        %v676 = vld [vmem:[#allocation9 + $0x150] sm:$0xff]
        %v677 = vld [vmem:[#allocation9 + $0x158] sm:$0xff]
        %v678 = vld [vmem:[#allocation9 + $0x160] sm:$0xff]
        %v679 = vld [vmem:[#allocation9 + $0x168] sm:$0xff]
        %v680 = vld [vmem:[#allocation9 + $0x170] sm:$0xff]
        %v681 = vld [vmem:[#allocation9 + $0x178] sm:$0xff]
        %v682 = vld [vmem:[#allocation9 + $0x180] sm:$0xff]
        %v683 = vld [vmem:[#allocation9 + $0x188] sm:$0xff]
        %v684 = vld [vmem:[#allocation9 + $0x190] sm:$0xff]
        %v685 = vld [vmem:[#allocation9 + $0x198] sm:$0xff]
        %v686 = vld [vmem:[#allocation9 + $0x1a0] sm:$0xff]
        %v687 = vld [vmem:[#allocation9 + $0x1a8] sm:$0xff]
        %v688 = vld [vmem:[#allocation9 + $0x1b0] sm:$0xff]
        %v689 = vld [vmem:[#allocation9 + $0x1b8] sm:$0xff]
        %v690 = vld [vmem:[#allocation9 + $0x1c0] sm:$0xff]
        %v691 = vld [vmem:[#allocation9 + $0x1c8] sm:$0xff]
        %v692 = vld [vmem:[#allocation9 + $0x1d0] sm:$0xff]
        %v693 = vld [vmem:[#allocation9 + $0x1d8] sm:$0xff]
        %v694 = vld [vmem:[#allocation9 + $0x1e0] sm:$0xff]
        %v695 = vld [vmem:[#allocation9 + $0x1e8] sm:$0xff]
        %v696 = vld [vmem:[#allocation9 + $0x1f0] sm:$0xff]
        %v697 = vld [vmem:[#allocation9 + $0x1f8] sm:$0xff]
        %v698 = vld [vmem:[#allocation9 + $0x200] sm:$0xff]
        %v699 = vld [vmem:[#allocation9 + $0x208] sm:$0xff]
        %v700 = vld [vmem:[#allocation9 + $0x210] sm:$0xff]
        %v701 = vld [vmem:[#allocation9 + $0x218] sm:$0xff]
        %v702 = vld [vmem:[#allocation9 + $0x220] sm:$0xff]
        %v703 = vld [vmem:[#allocation9 + $0x228] sm:$0xff]
        %v704 = vld [vmem:[#allocation9 + $0x230] sm:$0xff]
        %v705 = vld [vmem:[#allocation9 + $0x238] sm:$0xff]
        %v706 = vld [vmem:[#allocation9 + $0x240] sm:$0xff]
        %v707 = vld [vmem:[#allocation9 + $0x248] sm:$0xff]
        %v708 = vld [vmem:[#allocation9 + $0x250] sm:$0xff]
        %v709 = vld [vmem:[#allocation9 + $0x258] sm:$0xff]
        %v710 = vld [vmem:[#allocation9 + $0x260] sm:$0xff]
        %v711 = vld [vmem:[#allocation9 + $0x268] sm:$0xff]
        %v712 = vld [vmem:[#allocation9 + $0x270] sm:$0xff]
        %v713 = vld [vmem:[#allocation9 + $0x278] sm:$0xff]
        %v714 = vld [vmem:[#allocation9 + $0x280] sm:$0xff]
        %v715 = vld [vmem:[#allocation9 + $0x288] sm:$0xff]
        %v716 = vld [vmem:[#allocation9 + $0x290] sm:$0xff]
        %v717 = vld [vmem:[#allocation9 + $0x298] sm:$0xff]
        %v718 = vld [vmem:[#allocation9 + $0x2a0] sm:$0xff]
        %v719 = vld [vmem:[#allocation9 + $0x2a8] sm:$0xff]
        %v720 = vld [vmem:[#allocation9 + $0x2b0] sm:$0xff]
        %v721 = vld [vmem:[#allocation9 + $0x2b8] sm:$0xff]
        %v722 = vld [vmem:[#allocation9 + $0x2c0] sm:$0xff]
        %v723 = vld [vmem:[#allocation9 + $0x2c8] sm:$0xff]
        %v724 = vld [vmem:[#allocation9 + $0x2d0] sm:$0xff]
        %v725 = vld [vmem:[#allocation9 + $0x2d8] sm:$0xff]
        %v726 = vld [vmem:[#allocation9 + $0x2e0] sm:$0xff]
        %v727 = vld [vmem:[#allocation9 + $0x2e8] sm:$0xff]
        %v728 = vld [vmem:[#allocation9 + $0x2f0] sm:$0xff]
        %v729 = vld [vmem:[#allocation9 + $0x2f8] sm:$0xff]
        %v730 = vld [vmem:[#allocation9 + $0x300] sm:$0xff]
        %v731 = vld [vmem:[#allocation9 + $0x308] sm:$0xff]
        %v732 = vld [vmem:[#allocation9 + $0x310] sm:$0xff]
        %v733 = vld [vmem:[#allocation9 + $0x318] sm:$0xff]
        %v734 = vld [vmem:[#allocation9 + $0x320] sm:$0xff]
        %v735 = vld [vmem:[#allocation9 + $0x328] sm:$0xff]
        %v736 = vld [vmem:[#allocation9 + $0x330] sm:$0xff]
        %v737 = vld [vmem:[#allocation9 + $0x338] sm:$0xff]
        %v738 = vld [vmem:[#allocation9 + $0x340] sm:$0xff]
        %v739 = vld [vmem:[#allocation9 + $0x348] sm:$0xff]
        %v740 = vld [vmem:[#allocation9 + $0x350] sm:$0xff]
        %v741 = vld [vmem:[#allocation9 + $0x358] sm:$0xff]
        %v742 = vld [vmem:[#allocation9 + $0x360] sm:$0xff]
        %v743 = vld [vmem:[#allocation9 + $0x368] sm:$0xff]
        %v744 = vld [vmem:[#allocation9 + $0x370] sm:$0xff]
        %v745 = vld [vmem:[#allocation9 + $0x378] sm:$0xff]
        %v746 = vld [vmem:[#allocation9 + $0x380] sm:$0xff]
        %v747 = vld [vmem:[#allocation9 + $0x388] sm:$0xff]
        %v748 = vld [vmem:[#allocation9 + $0x390] sm:$0xff]
        %v749 = vld [vmem:[#allocation9 + $0x398] sm:$0xff]
        %v750 = vld [vmem:[#allocation9 + $0x3a0] sm:$0xff]
        %v751 = vld [vmem:[#allocation9 + $0x3a8] sm:$0xff]
        %v752 = vld [vmem:[#allocation9 + $0x3b0] sm:$0xff]
        %v753 = vld [vmem:[#allocation9 + $0x3b8] sm:$0xff]
        %v754 = vld [vmem:[#allocation9 + $0x3c0] sm:$0xff]
        %v755 = vld [vmem:[#allocation9 + $0x3c8] sm:$0xff]
        %v756 = vld [vmem:[#allocation9 + $0x3d0] sm:$0xff]
        %v757 = vld [vmem:[#allocation9 + $0x3d8] sm:$0xff]
        %v758 = vld [vmem:[#allocation9 + $0x3e0] sm:$0xff]
        %v759 = vld [vmem:[#allocation9 + $0x3e8] sm:$0xff]
        %v760 = vld [vmem:[#allocation9 + $0x3f0] sm:$0xff]
        %v761 = vld [vmem:[#allocation9 + $0x3f8] sm:$0xff]
        %v762 = vld [vmem:[#allocation9 + $0x400] sm:$0xff]
        %v763 = vld [vmem:[#allocation9 + $0x408] sm:$0xff]
        %v764 = vld [vmem:[#allocation9 + $0x410] sm:$0xff]
        %v765 = vld [vmem:[#allocation9 + $0x418] sm:$0xff]
        %v766 = vld [vmem:[#allocation9 + $0x420] sm:$0xff]
        %v767 = vld [vmem:[#allocation9 + $0x428] sm:$0xff]
        %v768 = vld [vmem:[#allocation9 + $0x430] sm:$0xff]
        %v769 = vld [vmem:[#allocation9 + $0x438] sm:$0xff]
        %v770 = vld [vmem:[#allocation9 + $0x440] sm:$0xff]
        %v771 = vld [vmem:[#allocation9 + $0x448] sm:$0xff]
        %v772 = vld [vmem:[#allocation9 + $0x450] sm:$0xff]
        %v773 = vld [vmem:[#allocation9 + $0x458] sm:$0xff]
        %v774 = vld [vmem:[#allocation9 + $0x460] sm:$0xff]
        %v775 = vld [vmem:[#allocation9 + $0x468] sm:$0xff]
        %v776 = vld [vmem:[#allocation9 + $0x470] sm:$0xff]
        %v777 = vld [vmem:[#allocation9 + $0x478] sm:$0xff]
        %v778 = vld [vmem:[#allocation9 + $0x480] sm:$0xff]
        %v779 = vld [vmem:[#allocation9 + $0x488] sm:$0xff]
        %v780 = vld [vmem:[#allocation9 + $0x490] sm:$0xff]
        %v781 = vld [vmem:[#allocation9 + $0x498] sm:$0xff]
        %v782 = vld [vmem:[#allocation9 + $0x4a0] sm:$0xff]
        %v783 = vld [vmem:[#allocation9 + $0x4a8] sm:$0xff]
        %v784 = vld [vmem:[#allocation9 + $0x4b0] sm:$0xff]
        %v785 = vld [vmem:[#allocation9 + $0x4b8] sm:$0xff]
        %v786 = vld [vmem:[#allocation9 + $0x4c0] sm:$0xff]
        %v787 = vld [vmem:[#allocation9 + $0x4c8] sm:$0xff]
        %v788 = vld [vmem:[#allocation9 + $0x4d0] sm:$0xff]
        %v789 = vld [vmem:[#allocation9 + $0x4d8] sm:$0xff]
        %v790 = vld [vmem:[#allocation9 + $0x4e0] sm:$0xff]
        %v791 = vld [vmem:[#allocation9 + $0x4e8] sm:$0xff]
        %v792 = vld [vmem:[#allocation9 + $0x4f0] sm:$0xff]
        %v793 = vld [vmem:[#allocation9 + $0x4f8] sm:$0xff]
        %v794 = vld [vmem:[#allocation9 + $0x500] sm:$0xff]
        %v795 = vld [vmem:[#allocation9 + $0x508] sm:$0xff]
        %v796 = vld [vmem:[#allocation9 + $0x510] sm:$0xff]
        %v797 = vld [vmem:[#allocation9 + $0x518] sm:$0xff]
        %v798 = vld [vmem:[#allocation9 + $0x520] sm:$0xff]
        %v799 = vld [vmem:[#allocation9 + $0x528] sm:$0xff]
        %v800 = vld [vmem:[#allocation9 + $0x530] sm:$0xff]
        %v801 = vld [vmem:[#allocation9 + $0x538] sm:$0xff]
        %v802 = vld [vmem:[#allocation9 + $0x540] sm:$0xff]
        %v803 = vld [vmem:[#allocation9 + $0x548] sm:$0xff]
        %v804 = vld [vmem:[#allocation9 + $0x550] sm:$0xff]
        %v805 = vld [vmem:[#allocation9 + $0x558] sm:$0xff]
        %v806 = vld [vmem:[#allocation9 + $0x560] sm:$0xff]
        %v807 = vld [vmem:[#allocation9 + $0x568] sm:$0xff]
        %v808 = vld [vmem:[#allocation9 + $0x570] sm:$0xff]
        %v809 = vld [vmem:[#allocation9 + $0x578] sm:$0xff]
        %v810 = vld [vmem:[#allocation9 + $0x580] sm:$0xff]
        %v811 = vld [vmem:[#allocation9 + $0x588] sm:$0xff]
        %v812 = vld [vmem:[#allocation9 + $0x590] sm:$0xff]
        %v813 = vld [vmem:[#allocation9 + $0x598] sm:$0xff]
        %v814 = vld [vmem:[#allocation9 + $0x5a0] sm:$0xff]
        %v815 = vld [vmem:[#allocation9 + $0x5a8] sm:$0xff]
        %v816 = vld [vmem:[#allocation9 + $0x5b0] sm:$0xff]
        %v817 = vld [vmem:[#allocation9 + $0x5b8] sm:$0xff]
        %v818 = vld [vmem:[#allocation9 + $0x5c0] sm:$0xff]
        %v819 = vld [vmem:[#allocation9 + $0x5c8] sm:$0xff]
        %v820 = vld [vmem:[#allocation9 + $0x5d0] sm:$0xff]
        %v821 = vld [vmem:[#allocation9 + $0x5d8] sm:$0xff]
        %v822 = vld [vmem:[#allocation9 + $0x5e0] sm:$0xff]
        %v823 = vld [vmem:[#allocation9 + $0x5e8] sm:$0xff]
        %v824 = vld [vmem:[#allocation9 + $0x5f0] sm:$0xff]
        %v825 = vld [vmem:[#allocation9 + $0x5f8] sm:$0xff]
        %v826 = vld [vmem:[#allocation9 + $0x600] sm:$0xff]
        %v827 = vld [vmem:[#allocation9 + $0x608] sm:$0xff]
        %v828 = vld [vmem:[#allocation9 + $0x610] sm:$0xff]
        %v829 = vld [vmem:[#allocation9 + $0x618] sm:$0xff]
        %v830 = vld [vmem:[#allocation9 + $0x620] sm:$0xff]
        %v831 = vld [vmem:[#allocation9 + $0x628] sm:$0xff]
        %v832 = vld [vmem:[#allocation9 + $0x630] sm:$0xff]
        %v833 = vld [vmem:[#allocation9 + $0x638] sm:$0xff]
        %v834 = vld [vmem:[#allocation9 + $0x640] sm:$0xff]
        %v835 = vld [vmem:[#allocation9 + $0x648] sm:$0xff]
        %v836 = vld [vmem:[#allocation9 + $0x650] sm:$0xff]
        %v837 = vld [vmem:[#allocation9 + $0x658] sm:$0xff]
        %v838 = vld [vmem:[#allocation9 + $0x660] sm:$0xff]
        %v839 = vld [vmem:[#allocation9 + $0x668] sm:$0xff]
        %v840 = vld [vmem:[#allocation9 + $0x670] sm:$0xff]
        %v841 = vld [vmem:[#allocation9 + $0x678] sm:$0xff]
        %v842 = vld [vmem:[#allocation9 + $0x680] sm:$0xff]
        %v843 = vld [vmem:[#allocation9 + $0x688] sm:$0xff]
        %v844 = vld [vmem:[#allocation9 + $0x690] sm:$0xff]
        %v845 = vld [vmem:[#allocation9 + $0x698] sm:$0xff]
        %v846 = vld [vmem:[#allocation9 + $0x6a0] sm:$0xff]
        %v847 = vld [vmem:[#allocation9 + $0x6a8] sm:$0xff]
        %v848 = vld [vmem:[#allocation9 + $0x6b0] sm:$0xff]
        %v849 = vld [vmem:[#allocation9 + $0x6b8] sm:$0xff]
        %v850 = vld [vmem:[#allocation9 + $0x6c0] sm:$0xff]
        %v851 = vld [vmem:[#allocation9 + $0x6c8] sm:$0xff]
        %v852 = vld [vmem:[#allocation9 + $0x6d0] sm:$0xff]
        %v853 = vld [vmem:[#allocation9 + $0x6d8] sm:$0xff]
        %v854 = vld [vmem:[#allocation9 + $0x6e0] sm:$0xff]
        %v855 = vld [vmem:[#allocation9 + $0x6e8] sm:$0xff]
        %v856 = vld [vmem:[#allocation9 + $0x6f0] sm:$0xff]
        %v857 = vld [vmem:[#allocation9 + $0x6f8] sm:$0xff]
        %v858 = vld [vmem:[#allocation9 + $0x700] sm:$0xff]
        %v859 = vld [vmem:[#allocation9 + $0x708] sm:$0xff]
        %v860 = vld [vmem:[#allocation9 + $0x710] sm:$0xff]
        %v861 = vld [vmem:[#allocation9 + $0x718] sm:$0xff]
        %v862 = vld [vmem:[#allocation9 + $0x720] sm:$0xff]
        %v863 = vld [vmem:[#allocation9 + $0x728] sm:$0xff]
        %v864 = vld [vmem:[#allocation9 + $0x730] sm:$0xff]
        %v865 = vld [vmem:[#allocation9 + $0x738] sm:$0xff]
        %v866 = vld [vmem:[#allocation9 + $0x740] sm:$0xff]
        %v867 = vld [vmem:[#allocation9 + $0x748] sm:$0xff]
        %v868 = vld [vmem:[#allocation9 + $0x750] sm:$0xff]
        %v869 = vld [vmem:[#allocation9 + $0x758] sm:$0xff]
        %v870 = vld [vmem:[#allocation9 + $0x760] sm:$0xff]
        %v871 = vld [vmem:[#allocation9 + $0x768] sm:$0xff]
        %v872 = vld [vmem:[#allocation9 + $0x770] sm:$0xff]
        %v873 = vld [vmem:[#allocation9 + $0x778] sm:$0xff]
        %v874 = vld [vmem:[#allocation9 + $0x780] sm:$0xff]
        %v875 = vld [vmem:[#allocation9 + $0x788] sm:$0xff]
        %v876 = vld [vmem:[#allocation9 + $0x790] sm:$0xff]
        %v877 = vld [vmem:[#allocation9 + $0x798] sm:$0xff]
        %v878 = vld [vmem:[#allocation9 + $0x7a0] sm:$0xff]
        %v879 = vld [vmem:[#allocation9 + $0x7a8] sm:$0xff]
        %v880 = vld [vmem:[#allocation9 + $0x7b0] sm:$0xff]
        %v881 = vld [vmem:[#allocation9 + $0x7b8] sm:$0xff]
        %v882 = vld [vmem:[#allocation9 + $0x7c0] sm:$0xff]
        %v883 = vld [vmem:[#allocation9 + $0x7c8] sm:$0xff]
        %v884 = vld [vmem:[#allocation9 + $0x7d0] sm:$0xff]
        %v885 = vld [vmem:[#allocation9 + $0x7d8] sm:$0xff]
        %v886 = vld [vmem:[#allocation9 + $0x7e0] sm:$0xff]
        %v887 = vld [vmem:[#allocation9 + $0x7e8] sm:$0xff]
        %v888 = vld [vmem:[#allocation9 + $0x7f0] sm:$0xff]
        %v889 = vld [vmem:[#allocation9 + $0x7f8] sm:$0xff]
        %890 = vmatprep.subr.mxu0 %v755
        %891 = vmatpush1.msra.mxu0 %v754
        %892 = vmatprep.subr.mxu0 %v747
        %893 = vmatpush1.msra.mxu0 %v746
        %894 = vmatprep.subr.mxu0 %v739
        %895 = vmatpush1.msra.mxu0 %v738
        %896 = vmatprep.subr.mxu0 %v731
        %897 = vmatpush1.msra.mxu0 %v730
        %898 = vmatprep.subr.mxu0 %v723
        %899 = vmatpush1.msra.mxu0 %v722
        %900 = vmatprep.subr.mxu0 %v715
        %901 = vmatpush1.msra.mxu0 %v714
        %902 = vmatprep.subr.mxu0 %v707
        %903 = vmatpush1.msra.mxu0 %v706
        %904 = vmatprep.subr.mxu0 %v699
        %905 = vmatpush1.msra.mxu0 %v698
        %906 = vmatprep.subr.mxu0 %v691
        %907 = vmatpush1.msra.mxu0 %v690
        %908 = vmatprep.subr.mxu0 %v683
        %909 = vmatpush1.msra.mxu0 %v682
        %910 = vmatprep.subr.mxu0 %v675
        %911 = vmatpush1.msra.mxu0 %v674
        %912 = vmatprep.subr.mxu0 %v667
        %913 = vmatpush1.msra.mxu0 %v666
        %914 = vmatprep.subr.mxu0 %v659
        %915 = vmatpush1.msra.mxu0 %v658
        %916 = vmatprep.subr.mxu0 %v651
        %917 = vmatpush1.msra.mxu0 %v650
        %918 = vmatprep.subr.mxu0 %v643
        %919 = vmatpush1.msra.mxu0 %v642
        %920 = vmatprep.subr.mxu0 %v635
        %921 = vmatpush1.msra.mxu0 %v634
        %922 = vmatprep.subr.mxu0 %v883
        %923 = vmatpush2.msra.mxu0 %v882
        %924 = vmatprep.subr.mxu0 %v875
        %925 = vmatpush2.msra.mxu0 %v874
        %926 = vmatprep.subr.mxu0 %v867
        %927 = vmatpush2.msra.mxu0 %v866
        %928 = vmatprep.subr.mxu0 %v859
        %929 = vmatpush2.msra.mxu0 %v858
        %930 = vmatprep.subr.mxu0 %v851
        %931 = vmatpush2.msra.mxu0 %v850
        %932 = vmatprep.subr.mxu0 %v843
        %933 = vmatpush2.msra.mxu0 %v842
        %934 = vmatprep.subr.mxu0 %v835
        %935 = vmatpush2.msra.mxu0 %v834
        %936 = vmatprep.subr.mxu0 %v827
        %937 = vmatpush2.msra.mxu0 %v826
        %938 = vmatprep.subr.mxu0 %v819
        %939 = vmatpush2.msra.mxu0 %v818
        %940 = vmatprep.subr.mxu0 %v811
        %941 = vmatpush2.msra.mxu0 %v810
        %942 = vmatprep.subr.mxu0 %v803
        %943 = vmatpush2.msra.mxu0 %v802
        %944 = vmatprep.subr.mxu0 %v795
        %945 = vmatpush2.msra.mxu0 %v794
        %946 = vmatprep.subr.mxu0 %v787
        %947 = vmatpush2.msra.mxu0 %v786
        %948 = vmatprep.subr.mxu0 %v779
        %949 = vmatpush2.msra.mxu0 %v778
        %950 = vmatprep.subr.mxu0 %v771
        %951 = vmatpush2.msra.mxu0 %v770
        %952 = vmatprep.subr.mxu0 %v763
        %953 = vmatpush2.msra.mxu0 %v762
        %954 = vmatprep.mubr.f32.mxu0 %v633
        %955 = vmatmul.mubr.f32.gmra.mxu0 %v632
        %v956 = vpop.f32.mrf.mxu0
        %v957 = vadd.f32 0.0, %v956
        %v958 = vpop.f32.mrf.mxu0
        %v959 = vadd.f32 0.0, %v958
        %960 = vdwg.mxu0
        %961 = vmatprep.subr.mxu0 %v757
        %962 = vmatpush1.msra.mxu0 %v756
        %963 = vmatprep.subr.mxu0 %v749
        %964 = vmatpush1.msra.mxu0 %v748
        %965 = vmatprep.subr.mxu0 %v741
        %966 = vmatpush1.msra.mxu0 %v740
        %967 = vmatprep.subr.mxu0 %v733
        %968 = vmatpush1.msra.mxu0 %v732
        %969 = vmatprep.subr.mxu0 %v725
        %970 = vmatpush1.msra.mxu0 %v724
        %971 = vmatprep.subr.mxu0 %v717
        %972 = vmatpush1.msra.mxu0 %v716
        %973 = vmatprep.subr.mxu0 %v709
        %974 = vmatpush1.msra.mxu0 %v708
        %975 = vmatprep.subr.mxu0 %v701
        %976 = vmatpush1.msra.mxu0 %v700
        %977 = vmatprep.subr.mxu0 %v693
        %978 = vmatpush1.msra.mxu0 %v692
        %979 = vmatprep.subr.mxu0 %v685
        %980 = vmatpush1.msra.mxu0 %v684
        %981 = vmatprep.subr.mxu0 %v677
        %982 = vmatpush1.msra.mxu0 %v676
        %983 = vmatprep.subr.mxu0 %v669
        %984 = vmatpush1.msra.mxu0 %v668
        %985 = vmatprep.subr.mxu0 %v661
        %986 = vmatpush1.msra.mxu0 %v660
        %987 = vmatprep.subr.mxu0 %v653
        %988 = vmatpush1.msra.mxu0 %v652
        %989 = vmatprep.subr.mxu0 %v645
        %990 = vmatpush1.msra.mxu0 %v644
        %991 = vmatprep.subr.mxu0 %v637
        %992 = vmatpush1.msra.mxu0 %v636
        %993 = vmatprep.subr.mxu0 %v885
        %994 = vmatpush2.msra.mxu0 %v884
        %995 = vmatprep.subr.mxu0 %v877
        %996 = vmatpush2.msra.mxu0 %v876
        %997 = vmatprep.subr.mxu0 %v869
        %998 = vmatpush2.msra.mxu0 %v868
        %999 = vmatprep.subr.mxu0 %v861
        %1000 = vmatpush2.msra.mxu0 %v860
        %1001 = vmatprep.subr.mxu0 %v853
        %1002 = vmatpush2.msra.mxu0 %v852
        %1003 = vmatprep.subr.mxu0 %v845
        %1004 = vmatpush2.msra.mxu0 %v844
        %1005 = vmatprep.subr.mxu0 %v837
        %1006 = vmatpush2.msra.mxu0 %v836
        %1007 = vmatprep.subr.mxu0 %v829
        %1008 = vmatpush2.msra.mxu0 %v828
        %1009 = vmatprep.subr.mxu0 %v821
        %1010 = vmatpush2.msra.mxu0 %v820
        %1011 = vmatprep.subr.mxu0 %v813
        %1012 = vmatpush2.msra.mxu0 %v812
        %1013 = vmatprep.subr.mxu0 %v805
        %1014 = vmatpush2.msra.mxu0 %v804
        %1015 = vmatprep.subr.mxu0 %v797
        %1016 = vmatpush2.msra.mxu0 %v796
        %1017 = vmatprep.subr.mxu0 %v789
        %1018 = vmatpush2.msra.mxu0 %v788
        %1019 = vmatprep.subr.mxu0 %v781
        %1020 = vmatpush2.msra.mxu0 %v780
        %1021 = vmatprep.subr.mxu0 %v773
        %1022 = vmatpush2.msra.mxu0 %v772
        %1023 = vmatprep.subr.mxu0 %v765
        %1024 = vmatpush2.msra.mxu0 %v764
        %1025 = vmatprep.mubr.f32.mxu0 %v633
        %1026 = vmatmul.mubr.f32.gmra.mxu0 %v632
        %v1027 = vpop.f32.mrf.mxu0
        %v1028 = vadd.f32 0.0, %v1027
        %v1029 = vpop.f32.mrf.mxu0
        %v1030 = vadd.f32 0.0, %v1029
        %1031 = vdwg.mxu0
        %1032 = vmatprep.subr.mxu0 %v759
        %1033 = vmatpush1.msra.mxu0 %v758
        %1034 = vmatprep.subr.mxu0 %v751
        %1035 = vmatpush1.msra.mxu0 %v750
        %1036 = vmatprep.subr.mxu0 %v743
        %1037 = vmatpush1.msra.mxu0 %v742
        %1038 = vmatprep.subr.mxu0 %v735
        %1039 = vmatpush1.msra.mxu0 %v734
        %1040 = vmatprep.subr.mxu0 %v727
        %1041 = vmatpush1.msra.mxu0 %v726
        %1042 = vmatprep.subr.mxu0 %v719
        %1043 = vmatpush1.msra.mxu0 %v718
        %1044 = vmatprep.subr.mxu0 %v711
        %1045 = vmatpush1.msra.mxu0 %v710
        %1046 = vmatprep.subr.mxu0 %v703
        %1047 = vmatpush1.msra.mxu0 %v702
        %1048 = vmatprep.subr.mxu0 %v695
        %1049 = vmatpush1.msra.mxu0 %v694
        %1050 = vmatprep.subr.mxu0 %v687
        %1051 = vmatpush1.msra.mxu0 %v686
        %1052 = vmatprep.subr.mxu0 %v679
        %1053 = vmatpush1.msra.mxu0 %v678
        %1054 = vmatprep.subr.mxu0 %v671
        %1055 = vmatpush1.msra.mxu0 %v670
        %1056 = vmatprep.subr.mxu0 %v663
        %1057 = vmatpush1.msra.mxu0 %v662
        %1058 = vmatprep.subr.mxu0 %v655
        %1059 = vmatpush1.msra.mxu0 %v654
        %1060 = vmatprep.subr.mxu0 %v647
        %1061 = vmatpush1.msra.mxu0 %v646
        %1062 = vmatprep.subr.mxu0 %v639
        %1063 = vmatpush1.msra.mxu0 %v638
        %1064 = vmatprep.subr.mxu0 %v887
        %1065 = vmatpush2.msra.mxu0 %v886
        %1066 = vmatprep.subr.mxu0 %v879
        %1067 = vmatpush2.msra.mxu0 %v878
        %1068 = vmatprep.subr.mxu0 %v871
        %1069 = vmatpush2.msra.mxu0 %v870
        %1070 = vmatprep.subr.mxu0 %v863
        %1071 = vmatpush2.msra.mxu0 %v862
        %1072 = vmatprep.subr.mxu0 %v855
        %1073 = vmatpush2.msra.mxu0 %v854
        %1074 = vmatprep.subr.mxu0 %v847
        %1075 = vmatpush2.msra.mxu0 %v846
        %1076 = vmatprep.subr.mxu0 %v839
        %1077 = vmatpush2.msra.mxu0 %v838
        %1078 = vmatprep.subr.mxu0 %v831
        %1079 = vmatpush2.msra.mxu0 %v830
        %1080 = vmatprep.subr.mxu0 %v823
        %1081 = vmatpush2.msra.mxu0 %v822
        %1082 = vmatprep.subr.mxu0 %v815
        %1083 = vmatpush2.msra.mxu0 %v814
        %1084 = vmatprep.subr.mxu0 %v807
        %1085 = vmatpush2.msra.mxu0 %v806
        %1086 = vmatprep.subr.mxu0 %v799
        %1087 = vmatpush2.msra.mxu0 %v798
        %1088 = vmatprep.subr.mxu0 %v791
        %1089 = vmatpush2.msra.mxu0 %v790
        %1090 = vmatprep.subr.mxu0 %v783
        %1091 = vmatpush2.msra.mxu0 %v782
        %1092 = vmatprep.subr.mxu0 %v775
        %1093 = vmatpush2.msra.mxu0 %v774
        %1094 = vmatprep.subr.mxu0 %v767
        %1095 = vmatpush2.msra.mxu0 %v766
        %1096 = vmatprep.mubr.f32.mxu0 %v633
        %1097 = vmatmul.mubr.f32.gmra.mxu0 %v632
        %v1098 = vpop.f32.mrf.mxu0
        %v1099 = vadd.f32 0.0, %v1098
        %v1100 = vpop.f32.mrf.mxu0
        %v1101 = vadd.f32 0.0, %v1100
        %1102 = vdwg.mxu0
        %1103 = vmatprep.subr.mxu0 %v761
        %1104 = vmatpush1.msra.mxu0 %v760
        %1105 = vmatprep.subr.mxu0 %v753
        %1106 = vmatpush1.msra.mxu0 %v752
        %1107 = vmatprep.subr.mxu0 %v745
        %1108 = vmatpush1.msra.mxu0 %v744
        %1109 = vmatprep.subr.mxu0 %v737
        %1110 = vmatpush1.msra.mxu0 %v736
        %1111 = vmatprep.subr.mxu0 %v729
        %1112 = vmatpush1.msra.mxu0 %v728
        %1113 = vmatprep.subr.mxu0 %v721
        %1114 = vmatpush1.msra.mxu0 %v720
        %1115 = vmatprep.subr.mxu0 %v713
        %1116 = vmatpush1.msra.mxu0 %v712
        %1117 = vmatprep.subr.mxu0 %v705
        %1118 = vmatpush1.msra.mxu0 %v704
        %1119 = vmatprep.subr.mxu0 %v697
        %1120 = vmatpush1.msra.mxu0 %v696
        %1121 = vmatprep.subr.mxu0 %v689
        %1122 = vmatpush1.msra.mxu0 %v688
        %1123 = vmatprep.subr.mxu0 %v681
        %1124 = vmatpush1.msra.mxu0 %v680
        %1125 = vmatprep.subr.mxu0 %v673
        %1126 = vmatpush1.msra.mxu0 %v672
        %1127 = vmatprep.subr.mxu0 %v665
        %1128 = vmatpush1.msra.mxu0 %v664
        %1129 = vmatprep.subr.mxu0 %v657
        %1130 = vmatpush1.msra.mxu0 %v656
        %1131 = vmatprep.subr.mxu0 %v649
        %1132 = vmatpush1.msra.mxu0 %v648
        %1133 = vmatprep.subr.mxu0 %v641
        %1134 = vmatpush1.msra.mxu0 %v640
        %1135 = vmatprep.subr.mxu0 %v889
        %1136 = vmatpush2.msra.mxu0 %v888
        %1137 = vmatprep.subr.mxu0 %v881
        %1138 = vmatpush2.msra.mxu0 %v880
        %1139 = vmatprep.subr.mxu0 %v873
        %1140 = vmatpush2.msra.mxu0 %v872
        %1141 = vmatprep.subr.mxu0 %v865
        %1142 = vmatpush2.msra.mxu0 %v864
        %1143 = vmatprep.subr.mxu0 %v857
        %1144 = vmatpush2.msra.mxu0 %v856
        %1145 = vmatprep.subr.mxu0 %v849
        %1146 = vmatpush2.msra.mxu0 %v848
        %1147 = vmatprep.subr.mxu0 %v841
        %1148 = vmatpush2.msra.mxu0 %v840
        %1149 = vmatprep.subr.mxu0 %v833
        %1150 = vmatpush2.msra.mxu0 %v832
        %1151 = vmatprep.subr.mxu0 %v825
        %1152 = vmatpush2.msra.mxu0 %v824
        %1153 = vmatprep.subr.mxu0 %v817
        %1154 = vmatpush2.msra.mxu0 %v816
        %1155 = vmatprep.subr.mxu0 %v809
        %1156 = vmatpush2.msra.mxu0 %v808
        %1157 = vmatprep.subr.mxu0 %v801
        %1158 = vmatpush2.msra.mxu0 %v800
        %1159 = vmatprep.subr.mxu0 %v793
        %1160 = vmatpush2.msra.mxu0 %v792
        %1161 = vmatprep.subr.mxu0 %v785
        %1162 = vmatpush2.msra.mxu0 %v784
        %1163 = vmatprep.subr.mxu0 %v777
        %1164 = vmatpush2.msra.mxu0 %v776
        %1165 = vmatprep.subr.mxu0 %v769
        %1166 = vmatpush2.msra.mxu0 %v768
        %1167 = vmatprep.mubr.f32.mxu0 %v633
        %1168 = vmatmul.mubr.f32.gmra.mxu0 %v632
        %v1169 = vpop.f32.mrf.mxu0
        %v1170 = vadd.f32 0.0, %v1169
        %v1171 = vpop.f32.mrf.mxu0
        %v1172 = vadd.f32 0.0, %v1171
        %1173 = vdwg.mxu0
        %v1174 = vld [vmem:[%s5] sm:$0x1]
        %s1175 = sld [smem:[#allocation4 + %s25]]
        %v1176 = vld [vmem:[%s5 + $0x1] sm:$0x1]
        %v1177 = vstv %s1175
        %v1178 = vmul.f32 %v1177, %v1176
        %v1179 = vadd.f32 %v1174, %v1178
        %v1180 = vadd.f32 %v1179, %v957
        %v1182 = vrot.slane %v959, 1
        %v1184 = vadd.f32 %v1180, %v1182
        %v1186 = vrot.slane %v1028, 2
        %v1188 = vadd.f32 %v1184, %v1186
        %v1190 = vrot.slane %v1030, 3
        %v1192 = vadd.f32 %v1188, %v1190
        %v1194 = vrot.slane %v1099, 4
        %v1196 = vadd.f32 %v1192, %v1194
        %v1198 = vrot.slane %v1101, 5
        %v1200 = vadd.f32 %v1196, %v1198
        %v1202 = vrot.slane %v1170, 6
        %v1204 = vadd.f32 %v1200, %v1202
        %v1206 = vrot.slane %v1172, 7
        %v1208 = vadd.f32 %v1204, %v1206
        %1209 = vst [vmem:[%s295] sm:$0x1] %v1208
        %s1210 = sand.u32 %s164, 1
        %s1211 = scalar_lea.sflag [#allocation6], %s1210
        %s1212 = sand.u32 %s164, 1
        %s1213 = scalar_lea.vmem [#allocation11], %s1212
        // Predicated region
        $region57: #{tpu_custom_call.1} parent=43 // pred_check
          %p1214 = pneg %p174
        $region58: #{tpu_custom_call.1} parent=43 // pred_check_branch
          %1216 = sbr.rel (%p1214) target = $region60
        $region59: #{tpu_custom_call.1} parent=43 // pred_region
          %s1218 = ssub.s32 16, 16
          %1219 = vsyncadd %s1211, %s1218
          %s1220 = smul.addr %s25, 16
          %s1221 = scalar_lea.hbm %s6, %s1220
          %s1223 = sshll.u32 %s1213, 4
          %s1224 = int_to_ptr.vmem [resolvable:$true] %s1223
          %1226 = dma.vmem_to_hbm [thread:$0]  %s1224, 16, %s1221, %s1211
        $region60: #{tpu_custom_call.1} parent=43 // pred_fallthru
          _
      $region44: #{tpu_custom_call.1} parent=5 // pred_fallthru
        _
      %p1227 = scmp.le.s32.totalorder 2, %s20
      // Predicated region
      $region61: #{tpu_custom_call.1} parent=5 // pred_check
        %p1228 = pneg %p1227
      $region62: #{tpu_custom_call.1} parent=5 // pred_check_branch
        %1230 = sbr.rel (%p1228) target = $region64
      $region63: #{tpu_custom_call.1} parent=5 // pred_region
        %s1231 = ssub.s32 %s20, 2
        // Predicated region
        $region65: #{tpu_custom_call.1} parent=63 // pred_check
          %p1232 = pneg %p180
        $region66: #{tpu_custom_call.1} parent=63 // pred_check_branch
          %1234 = sbr.rel (%p1232) target = $region68
        $region67: #{tpu_custom_call.1} parent=63 // pred_region
          %s1235 = sand.u32 %s165, 1
          %s1236 = scalar_lea.sflag [#allocation6], %s1235
          %s1237 = sand.u32 %s165, 1
          %s1238 = scalar_lea.vmem [#allocation11], %s1237
          %1239 = dma.done %s1236, 16
        $region68: #{tpu_custom_call.1} parent=63 // pred_fallthru
          _
      $region64: #{tpu_custom_call.1} parent=5 // pred_fallthru
        _
    $region6: #{tpu_custom_call.1} parent=1 // loop_footer
      %s24 = sadd.s32 1, %s20
    $region7: #{tpu_custom_call.1} parent=1 // loop_footer_branch
      %19 = sbr.rel target = $region3
    $region8: #{tpu_custom_call.1} parent=1 // loop_exit
      _
    %1240 = vsyncpa [#allocation5], 1
    %s1241 = scalar_lea.sflag [#allocation5], 1
    %1242 = vsyncpa %s1241, 1
    %1243 = vsyncpa [#allocation10], 1
    %1244 = vsyncpa [#allocation6], 1
    %s1245 = scalar_lea.sflag [#allocation6], 1
    %1246 = vsyncpa %s1245, 1
    %1247 = vsyncpa [#allocation7], 1
    %s1248 = scalar_lea.sflag [#allocation7], 1
    %1249 = vsyncpa %s1248, 1

</llo_original>
